<compile_context>
chip_gen: v5e
topology: v5e:2x2
jax: 0.10.0
libtpu: 0.0.40
codegen_flags: <defaults>
</compile_context>

<pallas_src>
import functools

import jax
import jax.numpy as jnp
import numpy as np
from jax.experimental import pallas as pl
from jax.experimental.pallas import tpu as pltpu


# --------------------------------- Kernel ---------------------------------
def _make_decoder_kernel(num_heads):
    H = num_heads
    f32 = jnp.float32

    def kernel(x_ref,
               wqkv_a_ref, bqkv_a_ref, wsc_a_ref, bout_a_ref, g1_ref, be1_ref,
               wqkv_b_ref, bqkv_b_ref, wsc_b_ref, bout_b_ref, g2_ref, be2_ref,
               w1_ref, b1_ref, w2_ref, b2_ref, g3_ref, be3_ref,
               bd_ref, gsum_ref, gexp_ref, aexp_ref, col_ref, gat_ref, msk_ref,
               o_ref):
        x = x_ref[...]                                   # (R, D) = (N*S, D)
        bd = bd_ref[...]                                 # (H*D, H*H) score group-sum
        gsum = gsum_ref[...]                             # (H*H, H)   softmax denom
        gexp = gexp_ref[...]                             # (H, H*H)   group broadcast
        aexp = aexp_ref[...]                             # (H*H, H*D) prob -> lanes
        col = col_ref[...]                               # (H*D, D)   fold key heads
        HD = bd.shape[0]                                 # H * D

        def layer_norm(z, g, b):
            mu = jnp.mean(z, axis=-1, keepdims=True)
            var = jnp.mean((z - mu) ** 2, axis=-1, keepdims=True)
            return (z - mu) * jax.lax.rsqrt(var + 1e-5) * g + b

        def attn(xin, wqkv_ref, bqkv_ref, wsc_ref, bout_ref):
            # One lane-dense matmul produces q (pre-scaled, head-replicated),
            # k (tiled) and v (tiled); the slices are 128-lane vreg aligned.
            qkv = jnp.dot(xin, wqkv_ref[...], preferred_element_type=f32)
            qkv = qkv + bqkv_ref[...]                    # (R, 3*H*D)
            q_exp = qkv[:, :HD]
            k_exp = qkv[:, HD:2 * HD]
            v_exp = qkv[:, 2 * HD:]
            # Scores: column h1*H + h2 = <q_h1, k_h2> / sqrt(hd) (head mixing,
            # faithful to the reference's mislabeled einsum).
            e = jnp.dot(q_exp * k_exp, bd, preferred_element_type=f32)   # (R, H*H)
            # Exact per-query-head max (same stabilization as the reference).
            m = jnp.zeros_like(e)
            for h1 in range(H):
                mg = jnp.max(e[:, h1 * H:(h1 + 1) * H], axis=-1, keepdims=True)
                m = m + mg * gexp[h1:h1 + 1, :]
            p = jnp.exp(e - m)
            denom = jnp.dot(p, gsum, preferred_element_type=f32)          # (R, H)
            a = p * jnp.dot(1.0 / denom, gexp, preferred_element_type=f32)
            # Per-query-head context, lane-dense:
            #   ctx[:, h1*hd+d] = sum_h2 a[:, h1*H+h2] * v[:, h2*hd+d]
            ctx = jnp.dot(jnp.dot(a, aexp, preferred_element_type=f32) * v_exp,
                          col, preferred_element_type=f32)                # (R, D)
            # torch's raw (N, H, S, hd) -> (N, S, D) reshape + fc_out, folded
            # into H precomputed (row-gather, head-mask, tiled-weight) triples.
            out = bout_ref[...]
            for blk in range(H):
                gathered = jnp.dot(gat_ref[blk], ctx, preferred_element_type=f32)
                out = out + jnp.dot(gathered * msk_ref[blk], wsc_ref[blk],
                                    preferred_element_type=f32)
            return out

        a1 = attn(x, wqkv_a_ref, bqkv_a_ref, wsc_a_ref, bout_a_ref)
        x1 = layer_norm(a1 + x, g1_ref[...], be1_ref[...])
        a2 = attn(x1, wqkv_b_ref, bqkv_b_ref, wsc_b_ref, bout_b_ref)
        x2 = layer_norm(a2 + x1, g2_ref[...], be2_ref[...])
        h = jnp.maximum(
            jnp.dot(x2, w1_ref[...], preferred_element_type=f32) + b1_ref[...], 0.0)
        # Dropout is identity in eval mode.
        ff = jnp.dot(h, w2_ref[...], preferred_element_type=f32) + b2_ref[...]
        o_ref[...] = layer_norm(ff + x2, g3_ref[...], be3_ref[...]).astype(o_ref.dtype)

    return kernel


# ------------------------ Host-side one-time prep -------------------------
def prepare_params(params, num_heads):
    """One-time host-side weight folding (kept out of the per-forward path)."""
    H = num_heads
    p = {k: np.asarray(v, np.float32) for k, v in params.items()}
    D = p["wout_a"].shape[0]
    hd = D // H
    scale = 1.0 / float(hd) ** 0.5
    # col_q[h1*D + h2*hd + d] = h1*hd + d : replicate query head h1 across the
    # H key-head sub-blocks of its lane group.
    col_q = np.array([h1 * hd + (j % hd) for h1 in range(H) for j in range(D)])

    prep = {}
    for tag in ("a", "b"):
        wqkv, bqkv = p[f"wqkv_{tag}"], p[f"bqkv_{tag}"]
        wq_t, wk_t, wv_t = wqkv[:D].T, wqkv[D:2 * D].T, wqkv[2 * D:].T
        bq, bk, bv = bqkv[:D], bqkv[D:2 * D], bqkv[2 * D:]
        wq_exp, bq_exp = wq_t[:, col_q] * scale, bq[col_q] * scale
        wk_exp, bk_exp = np.tile(wk_t, (1, H)), np.tile(bk, H)
        wv_exp, bv_exp = np.tile(wv_t, (1, H)), np.tile(bv, H)
        prep[f"wqkv_exp_{tag}"] = np.concatenate([wq_exp, wk_exp, wv_exp], 1)
        prep[f"bqkv_exp_{tag}"] = np.concatenate([bq_exp, bk_exp, bv_exp])[None]
        wout_t = p[f"wout_{tag}"].T                      # (D, D)
        prep[f"wout_scram_{tag}"] = np.stack(
            [np.tile(wout_t[blk * hd:(blk + 1) * hd, :], (H, 1))
             for blk in range(H)])
        prep[f"bout_{tag}"] = p[f"bout_{tag}"][None]
    prep["w1_t"], prep["b1"] = p["w1"].T, p["b1"][None]
    prep["w2_t"], prep["b2"] = p["w2"].T, p["b2"][None]
    for k in ("g1", "be1", "g2", "be2", "g3", "be3"):
        prep[k] = p[k][None]
    return {k: jnp.asarray(v, jnp.float32) for k, v in prep.items()}


@functools.lru_cache(maxsize=None)
def _routing_constants(N, S, D, H):
    """Loop-invariant 0/1 routing matrices, built once on the host."""
    hd, R = D // H, N * S
    HD, HH = H * D, H * H
    c = np.arange(HD)[:, None]
    bd = (c // hd == np.arange(HH)[None, :]).astype(np.float32)            # (HD, HH)
    aexp = bd.T.copy()                                                     # (HH, HD)
    gsum = (np.arange(HH)[:, None] // H
            == np.arange(H)[None, :]).astype(np.float32)                   # (HH, H)
    gexp = gsum.T.copy()                                                   # (H, HH)
    col = ((c // D) * hd + (c % hd)
           == np.arange(D)[None, :]).astype(np.float32)                    # (HD, D)
    # torch's .reshape(N, S, D) of the (N, H, S, hd) context: output row s,
    # head-block blk pulls ctx row (s*H+blk) % S, query head (s*H+blk) // S.
    gat = np.zeros((H, R, R), np.float32)
    msk = np.zeros((H, R, D), np.float32)
    for blk in range(H):
        for n in range(N):
            for s in range(S):
                h1, sp = divmod(s * H + blk, S)
                gat[blk, n * S + s, n * S + sp] = 1.0
                msk[blk, n * S + s, h1 * hd:(h1 + 1) * hd] = 1.0
    return tuple(jnp.asarray(v) for v in (bd, gsum, gexp, aexp, col, gat, msk))


# --------------------------------- Wrapper ---------------------------------
def decoder_layer_forward(x, enc_out, prep, num_heads,
                          src_mask=None, trg_mask=None):
    """Fused DecoderLayer forward: one grid-less pallas_call over (N*S, D)."""
    # TODO(synk): masked_fill (mask == 0 -> -1e20) branch not implemented; the
    # reference module's own encoder_attention(x, enc_out, src_mask) call is a
    # TypeError in PyTorch, so callers must pass src_mask=None, trg_mask=None.
    assert src_mask is None and trg_mask is None
    del enc_out  # cannot influence the reference module's output (see header)

    N, S, D = x.shape
    H = num_heads
    assert D % H == 0
    R = N * S

    bd, gsum, gexp, aexp, col, gat, msk = _routing_constants(N, S, D, H)
    args = (
        x.reshape(R, D),
        prep["wqkv_exp_a"], prep["bqkv_exp_a"], prep["wout_scram_a"],
        prep["bout_a"], prep["g1"], prep["be1"],
        prep["wqkv_exp_b"], prep["bqkv_exp_b"], prep["wout_scram_b"],
        prep["bout_b"], prep["g2"], prep["be2"],
        prep["w1_t"], prep["b1"], prep["w2_t"], prep["b2"],
        prep["g3"], prep["be3"],
        bd, gsum, gexp, aexp, col, gat, msk,
    )
    # Everything is VMEM-resident exactly once (no pipeline, no double
    # buffering); size the limit from actual bytes plus generous headroom.
    resident = sum(int(np.prod(a.shape)) * 4 for a in args) + R * D * 4
    vmem_limit = int(max(4 * 1024 * 1024, 8 * resident))

    vmem = pl.BlockSpec(memory_space=pltpu.MemorySpace.VMEM)
    out2d = pl.pallas_call(
        _make_decoder_kernel(H),
        out_shape=jax.ShapeDtypeStruct((R, D), jnp.float32),
        in_specs=[vmem] * len(args),
        out_specs=vmem,
        compiler_params=pltpu.CompilerParams(vmem_limit_bytes=vmem_limit),
    )(*args)
    # TODO(synk): at real shapes, tile S / d_ff with a grid, swap the dense
    # (N*S, N*S) gather matrices for a scalar-prefetched index gather, and
    # cast matmul operands to bf16 (withheld here to keep the 1e-4 check).
    return out2d.reshape(N, S, D)


# ----------------------------- Pure-JAX reference -----------------------------
def _mha_reference(x, wqkv, bqkv, wout, bout, num_heads):
    N, S, D = x.shape
    hd = D // num_heads
    qkv = x @ wqkv.T + bqkv
    qkv = jnp.transpose(qkv.reshape(N, S, 3, num_heads, hd), (2, 0, 3, 1, 4))
    q, k, v = qkv[0], qkv[1], qkv[2]
    # Buggy-by-design einsum labels, reproduced verbatim from the PyTorch module.
    energy = jnp.einsum('nqhd,nkhd->nhqk', q, k)
    attn = jax.nn.softmax(energy / hd ** 0.5, axis=3)
    out = jnp.einsum('nhql,nlhd->nqhd', attn, v).reshape(N, S, D)
    return out @ wout.T + bout


def _layer_norm_reference(z, g, b):
    mu = jnp.mean(z, -1, keepdims=True)
    var = jnp.mean((z - mu) ** 2, -1, keepdims=True)
    return (z - mu) / jnp.sqrt(var + 1e-5) * g + b


def reference_forward(x, enc_out, params, num_heads):
    del enc_out  # the reference module cannot consume it (see header note)
    a1 = _mha_reference(x, params["wqkv_a"], params["bqkv_a"],
                        params["wout_a"], params["bout_a"], num_heads)
    x1 = _layer_norm_reference(a1 + x, params["g1"], params["be1"])
    a2 = _mha_reference(x1, params["wqkv_b"], params["bqkv_b"],
                        params["wout_b"], params["bout_b"], num_heads)
    x2 = _layer_norm_reference(a2 + x1, params["g2"], params["be2"])
    h = jax.nn.relu(x2 @ params["w1"].T + params["b1"])
    ff = h @ params["w2"].T + params["b2"]
    return _layer_norm_reference(ff + x2, params["g3"], params["be3"])


if __name__ == "__main__":
    N, S, D, H, DFF = 2, 8, 32, 4, 64
    key = jax.random.PRNGKey(0)
    ks = jax.random.split(key, 20)

    def rnd(i, shape, scale=0.1):
        return scale * jax.random.normal(ks[i], shape, jnp.float32)

    params = {
        "wqkv_a": rnd(0, (3 * D, D)), "bqkv_a": rnd(1, (3 * D,)),
        "wout_a": rnd(2, (D, D)), "bout_a": rnd(3, (D,)),
        "g1": 1.0 + rnd(4, (D,)), "be1": rnd(5, (D,)),
        "wqkv_b": rnd(6, (3 * D, D)), "bqkv_b": rnd(7, (3 * D,)),
        "wout_b": rnd(8, (D, D)), "bout_b": rnd(9, (D,)),
        "g2": 1.0 + rnd(10, (D,)), "be2": rnd(11, (D,)),
        "w1": rnd(12, (DFF, D)), "b1": rnd(13, (DFF,)),
        "w2": rnd(14, (D, DFF)), "b2": rnd(15, (D,)),
        "g3": 1.0 + rnd(16, (D,)), "be3": rnd(17, (D,)),
    }
    x = jax.random.normal(ks[18], (N, S, D), jnp.float32)
    enc_out = jax.random.normal(ks[19], (N, S, D), jnp.float32)

    prep = prepare_params(params, num_heads=H)
    out = decoder_layer_forward(x, enc_out, prep, num_heads=H)
    out = jax.block_until_ready(out)

    ref = reference_forward(x, enc_out, params, num_heads=H)
    assert out.shape == (N, S, D)
    err = float(jnp.max(jnp.abs(out - ref)))
    assert jnp.allclose(out, ref, atol=1e-4, rtol=1e-4), f"max abs err = {err}"
    print("KERNEL_OK")
</pallas_src>

<mosaic_0001>
module attributes {stable_mosaic.version = 11 : i64} {
  func.func @kernel(%arg0: memref<16x32xf32, #tpu.memory_space<vmem>>, %arg1: memref<32x384xf32, #tpu.memory_space<vmem>>, %arg2: memref<1x384xf32, #tpu.memory_space<vmem>>, %arg3: memref<4x32x32xf32, #tpu.memory_space<vmem>>, %arg4: memref<1x32xf32, #tpu.memory_space<vmem>>, %arg5: memref<1x32xf32, #tpu.memory_space<vmem>>, %arg6: memref<1x32xf32, #tpu.memory_space<vmem>>, %arg7: memref<32x384xf32, #tpu.memory_space<vmem>>, %arg8: memref<1x384xf32, #tpu.memory_space<vmem>>, %arg9: memref<4x32x32xf32, #tpu.memory_space<vmem>>, %arg10: memref<1x32xf32, #tpu.memory_space<vmem>>, %arg11: memref<1x32xf32, #tpu.memory_space<vmem>>, %arg12: memref<1x32xf32, #tpu.memory_space<vmem>>, %arg13: memref<32x64xf32, #tpu.memory_space<vmem>>, %arg14: memref<1x64xf32, #tpu.memory_space<vmem>>, %arg15: memref<64x32xf32, #tpu.memory_space<vmem>>, %arg16: memref<1x32xf32, #tpu.memory_space<vmem>>, %arg17: memref<1x32xf32, #tpu.memory_space<vmem>>, %arg18: memref<1x32xf32, #tpu.memory_space<vmem>>, %arg19: memref<128x16xf32, #tpu.memory_space<vmem>>, %arg20: memref<16x4xf32, #tpu.memory_space<vmem>>, %arg21: memref<4x16xf32, #tpu.memory_space<vmem>>, %arg22: memref<16x128xf32, #tpu.memory_space<vmem>>, %arg23: memref<128x32xf32, #tpu.memory_space<vmem>>, %arg24: memref<4x16x16xf32, #tpu.memory_space<vmem>>, %arg25: memref<4x16x32xf32, #tpu.memory_space<vmem>>, %arg26: memref<16x32xf32, #tpu.memory_space<vmem>>) attributes {dimension_semantics = [], scalar_prefetch = 0 : i64, scratch_operands = 0 : i64, tpu.core_type = #tpu.core_type<tc>} {
    %c0 = arith.constant 0 : index
    %c0_0 = arith.constant 0 : index
    %0 = vector.load %arg0[%c0, %c0_0] : memref<16x32xf32, #tpu.memory_space<vmem>>, vector<16x32xf32>
    %c0_1 = arith.constant 0 : index
    %c0_2 = arith.constant 0 : index
    %1 = vector.load %arg19[%c0_1, %c0_2] : memref<128x16xf32, #tpu.memory_space<vmem>>, vector<128x16xf32>
    %c0_3 = arith.constant 0 : index
    %c0_4 = arith.constant 0 : index
    %2 = vector.load %arg20[%c0_3, %c0_4] : memref<16x4xf32, #tpu.memory_space<vmem>>, vector<16x4xf32>
    %c0_5 = arith.constant 0 : index
    %c0_6 = arith.constant 0 : index
    %3 = vector.load %arg21[%c0_5, %c0_6] : memref<4x16xf32, #tpu.memory_space<vmem>>, vector<4x16xf32>
    %c0_7 = arith.constant 0 : index
    %c0_8 = arith.constant 0 : index
    %4 = vector.load %arg22[%c0_7, %c0_8] : memref<16x128xf32, #tpu.memory_space<vmem>>, vector<16x128xf32>
    %c0_9 = arith.constant 0 : index
    %c0_10 = arith.constant 0 : index
    %5 = vector.load %arg23[%c0_9, %c0_10] : memref<128x32xf32, #tpu.memory_space<vmem>>, vector<128x32xf32>
    %c0_11 = arith.constant 0 : index
    %c0_12 = arith.constant 0 : index
    %6 = vector.load %arg1[%c0_11, %c0_12] : memref<32x384xf32, #tpu.memory_space<vmem>>, vector<32x384xf32>
    %cst = arith.constant dense<0.000000e+00> : vector<16x384xf32>
    %7 = tpu.matmul %0, %6, %cst {dimension_numbers = #tpu.dot_dimension_numbers<[1], [0], [0], [1], [0, 0, 1, 1], [], []>} : vector<16x32xf32>, vector<32x384xf32>, vector<16x384xf32> -> vector<16x384xf32>
    %c0_13 = arith.constant 0 : index
    %c0_14 = arith.constant 0 : index
    %8 = vector.load %arg2[%c0_13, %c0_14] : memref<1x384xf32, #tpu.memory_space<vmem>>, vector<1x384xf32>
    %9 = vector.broadcast %8 : vector<1x384xf32> to vector<16x384xf32>
    %10 = arith.addf %7, %9 : vector<16x384xf32>
    %11 = vector.extract_strided_slice %10 {offsets = [0, 0], sizes = [16, 128], strides = [1, 1]} : vector<16x384xf32> to vector<16x128xf32>
    %12 = vector.extract_strided_slice %10 {offsets = [0, 128], sizes = [16, 128], strides = [1, 1]} : vector<16x384xf32> to vector<16x128xf32>
    %13 = vector.extract_strided_slice %10 {offsets = [0, 256], sizes = [16, 128], strides = [1, 1]} : vector<16x384xf32> to vector<16x128xf32>
    %14 = arith.mulf %11, %12 : vector<16x128xf32>
    %cst_15 = arith.constant dense<0.000000e+00> : vector<16x16xf32>
    %15 = tpu.matmul %14, %1, %cst_15 {dimension_numbers = #tpu.dot_dimension_numbers<[1], [0], [0], [1], [0, 0, 1, 1], [], []>} : vector<16x128xf32>, vector<128x16xf32>, vector<16x16xf32> -> vector<16x16xf32>
    %cst_16 = arith.constant 0.000000e+00 : f32
    %16 = vector.broadcast %cst_16 : f32 to vector<16x16xf32>
    %17 = vector.extract_strided_slice %15 {offsets = [0, 0], sizes = [16, 4], strides = [1, 1]} : vector<16x16xf32> to vector<16x4xf32>
    %cst_17 = arith.constant dense<0xFF800000> : vector<16xf32>
    %18 = vector.multi_reduction <maximumf>, %17, %cst_17 [1] : vector<16x4xf32> to vector<16xf32>
    %19 = vector.shape_cast %18 : vector<16xf32> to vector<16x1xf32>
    %20 = vector.extract_strided_slice %3 {offsets = [0, 0], sizes = [1, 16], strides = [1, 1]} : vector<4x16xf32> to vector<1x16xf32>
    %21 = vector.broadcast %19 : vector<16x1xf32> to vector<16x16xf32>
    %22 = vector.broadcast %20 : vector<1x16xf32> to vector<16x16xf32>
    %23 = arith.mulf %21, %22 : vector<16x16xf32>
    %24 = arith.addf %16, %23 : vector<16x16xf32>
    %25 = vector.extract_strided_slice %15 {offsets = [0, 4], sizes = [16, 4], strides = [1, 1]} : vector<16x16xf32> to vector<16x4xf32>
    %cst_18 = arith.constant dense<0xFF800000> : vector<16xf32>
    %26 = vector.multi_reduction <maximumf>, %25, %cst_18 [1] : vector<16x4xf32> to vector<16xf32>
    %27 = vector.shape_cast %26 : vector<16xf32> to vector<16x1xf32>
    %28 = vector.extract_strided_slice %3 {offsets = [1, 0], sizes = [1, 16], strides = [1, 1]} : vector<4x16xf32> to vector<1x16xf32>
    %29 = vector.broadcast %27 : vector<16x1xf32> to vector<16x16xf32>
    %30 = vector.broadcast %28 : vector<1x16xf32> to vector<16x16xf32>
    %31 = arith.mulf %29, %30 : vector<16x16xf32>
    %32 = arith.addf %24, %31 : vector<16x16xf32>
    %33 = vector.extract_strided_slice %15 {offsets = [0, 8], sizes = [16, 4], strides = [1, 1]} : vector<16x16xf32> to vector<16x4xf32>
    %cst_19 = arith.constant dense<0xFF800000> : vector<16xf32>
    %34 = vector.multi_reduction <maximumf>, %33, %cst_19 [1] : vector<16x4xf32> to vector<16xf32>
    %35 = vector.shape_cast %34 : vector<16xf32> to vector<16x1xf32>
    %36 = vector.extract_strided_slice %3 {offsets = [2, 0], sizes = [1, 16], strides = [1, 1]} : vector<4x16xf32> to vector<1x16xf32>
    %37 = vector.broadcast %35 : vector<16x1xf32> to vector<16x16xf32>
    %38 = vector.broadcast %36 : vector<1x16xf32> to vector<16x16xf32>
    %39 = arith.mulf %37, %38 : vector<16x16xf32>
    %40 = arith.addf %32, %39 : vector<16x16xf32>
    %41 = vector.extract_strided_slice %15 {offsets = [0, 12], sizes = [16, 4], strides = [1, 1]} : vector<16x16xf32> to vector<16x4xf32>
    %cst_20 = arith.constant dense<0xFF800000> : vector<16xf32>
    %42 = vector.multi_reduction <maximumf>, %41, %cst_20 [1] : vector<16x4xf32> to vector<16xf32>
    %43 = vector.shape_cast %42 : vector<16xf32> to vector<16x1xf32>
    %44 = vector.extract_strided_slice %3 {offsets = [3, 0], sizes = [1, 16], strides = [1, 1]} : vector<4x16xf32> to vector<1x16xf32>
    %45 = vector.broadcast %43 : vector<16x1xf32> to vector<16x16xf32>
    %46 = vector.broadcast %44 : vector<1x16xf32> to vector<16x16xf32>
    %47 = arith.mulf %45, %46 : vector<16x16xf32>
    %48 = arith.addf %40, %47 : vector<16x16xf32>
    %49 = arith.subf %15, %48 : vector<16x16xf32>
    %50 = math.exp %49 : vector<16x16xf32>
    %cst_21 = arith.constant dense<0.000000e+00> : vector<16x4xf32>
    %51 = tpu.matmul %50, %2, %cst_21 {dimension_numbers = #tpu.dot_dimension_numbers<[1], [0], [0], [1], [0, 0, 1, 1], [], []>} : vector<16x16xf32>, vector<16x4xf32>, vector<16x4xf32> -> vector<16x4xf32>
    %cst_22 = arith.constant 1.000000e+00 : f32
    %52 = vector.broadcast %cst_22 : f32 to vector<16x4xf32>
    %53 = arith.divf %52, %51 : vector<16x4xf32>
    %cst_23 = arith.constant dense<0.000000e+00> : vector<16x16xf32>
    %54 = tpu.matmul %53, %3, %cst_23 {dimension_numbers = #tpu.dot_dimension_numbers<[1], [0], [0], [1], [0, 0, 1, 1], [], []>} : vector<16x4xf32>, vector<4x16xf32>, vector<16x16xf32> -> vector<16x16xf32>
    %55 = arith.mulf %50, %54 : vector<16x16xf32>
    %cst_24 = arith.constant dense<0.000000e+00> : vector<16x128xf32>
    %56 = tpu.matmul %55, %4, %cst_24 {dimension_numbers = #tpu.dot_dimension_numbers<[1], [0], [0], [1], [0, 0, 1, 1], [], []>} : vector<16x16xf32>, vector<16x128xf32>, vector<16x128xf32> -> vector<16x128xf32>
    %57 = arith.mulf %56, %13 : vector<16x128xf32>
    %cst_25 = arith.constant dense<0.000000e+00> : vector<16x32xf32>
    %58 = tpu.matmul %57, %5, %cst_25 {dimension_numbers = #tpu.dot_dimension_numbers<[1], [0], [0], [1], [0, 0, 1, 1], [], []>} : vector<16x128xf32>, vector<128x32xf32>, vector<16x32xf32> -> vector<16x32xf32>
    %c0_26 = arith.constant 0 : index
    %c0_27 = arith.constant 0 : index
    %59 = vector.load %arg4[%c0_26, %c0_27] : memref<1x32xf32, #tpu.memory_space<vmem>>, vector<1x32xf32>
    %c0_28 = arith.constant 0 : index
    %c0_29 = arith.constant 0 : index
    %c0_30 = arith.constant 0 : index
    %60 = vector.load %arg24[%c0_28, %c0_29, %c0_30] : memref<4x16x16xf32, #tpu.memory_space<vmem>>, vector<1x16x16xf32>
    %61 = vector.shape_cast %60 : vector<1x16x16xf32> to vector<16x16xf32>
    %cst_31 = arith.constant dense<0.000000e+00> : vector<16x32xf32>
    %62 = tpu.matmul %61, %58, %cst_31 {dimension_numbers = #tpu.dot_dimension_numbers<[1], [0], [0], [1], [0, 0, 1, 1], [], []>} : vector<16x16xf32>, vector<16x32xf32>, vector<16x32xf32> -> vector<16x32xf32>
    %c0_32 = arith.constant 0 : index
    %c0_33 = arith.constant 0 : index
    %c0_34 = arith.constant 0 : index
    %63 = vector.load %arg25[%c0_32, %c0_33, %c0_34] : memref<4x16x32xf32, #tpu.memory_space<vmem>>, vector<1x16x32xf32>
    %64 = vector.shape_cast %63 : vector<1x16x32xf32> to vector<16x32xf32>
    %65 = arith.mulf %62, %64 : vector<16x32xf32>
    %c0_35 = arith.constant 0 : index
    %c0_36 = arith.constant 0 : index
    %c0_37 = arith.constant 0 : index
    %66 = vector.load %arg3[%c0_35, %c0_36, %c0_37] : memref<4x32x32xf32, #tpu.memory_space<vmem>>, vector<1x32x32xf32>
    %67 = vector.shape_cast %66 : vector<1x32x32xf32> to vector<32x32xf32>
    %cst_38 = arith.constant dense<0.000000e+00> : vector<16x32xf32>
    %68 = tpu.matmul %65, %67, %cst_38 {dimension_numbers = #tpu.dot_dimension_numbers<[1], [0], [0], [1], [0, 0, 1, 1], [], []>} : vector<16x32xf32>, vector<32x32xf32>, vector<16x32xf32> -> vector<16x32xf32>
    %69 = vector.broadcast %59 : vector<1x32xf32> to vector<16x32xf32>
    %70 = arith.addf %69, %68 : vector<16x32xf32>
    %c1 = arith.constant 1 : index
    %c0_39 = arith.constant 0 : index
    %c0_40 = arith.constant 0 : index
    %71 = vector.load %arg24[%c1, %c0_39, %c0_40] : memref<4x16x16xf32, #tpu.memory_space<vmem>>, vector<1x16x16xf32>
    %72 = vector.shape_cast %71 : vector<1x16x16xf32> to vector<16x16xf32>
    %cst_41 = arith.constant dense<0.000000e+00> : vector<16x32xf32>
    %73 = tpu.matmul %72, %58, %cst_41 {dimension_numbers = #tpu.dot_dimension_numbers<[1], [0], [0], [1], [0, 0, 1, 1], [], []>} : vector<16x16xf32>, vector<16x32xf32>, vector<16x32xf32> -> vector<16x32xf32>
    %c1_42 = arith.constant 1 : index
    %c0_43 = arith.constant 0 : index
    %c0_44 = arith.constant 0 : index
    %74 = vector.load %arg25[%c1_42, %c0_43, %c0_44] : memref<4x16x32xf32, #tpu.memory_space<vmem>>, vector<1x16x32xf32>
    %75 = vector.shape_cast %74 : vector<1x16x32xf32> to vector<16x32xf32>
    %76 = arith.mulf %73, %75 : vector<16x32xf32>
    %c1_45 = arith.constant 1 : index
    %c0_46 = arith.constant 0 : index
    %c0_47 = arith.constant 0 : index
    %77 = vector.load %arg3[%c1_45, %c0_46, %c0_47] : memref<4x32x32xf32, #tpu.memory_space<vmem>>, vector<1x32x32xf32>
    %78 = vector.shape_cast %77 : vector<1x32x32xf32> to vector<32x32xf32>
    %cst_48 = arith.constant dense<0.000000e+00> : vector<16x32xf32>
    %79 = tpu.matmul %76, %78, %cst_48 {dimension_numbers = #tpu.dot_dimension_numbers<[1], [0], [0], [1], [0, 0, 1, 1], [], []>} : vector<16x32xf32>, vector<32x32xf32>, vector<16x32xf32> -> vector<16x32xf32>
    %80 = arith.addf %70, %79 : vector<16x32xf32>
    %c2 = arith.constant 2 : index
    %c0_49 = arith.constant 0 : index
    %c0_50 = arith.constant 0 : index
    %81 = vector.load %arg24[%c2, %c0_49, %c0_50] : memref<4x16x16xf32, #tpu.memory_space<vmem>>, vector<1x16x16xf32>
    %82 = vector.shape_cast %81 : vector<1x16x16xf32> to vector<16x16xf32>
    %cst_51 = arith.constant dense<0.000000e+00> : vector<16x32xf32>
    %83 = tpu.matmul %82, %58, %cst_51 {dimension_numbers = #tpu.dot_dimension_numbers<[1], [0], [0], [1], [0, 0, 1, 1], [], []>} : vector<16x16xf32>, vector<16x32xf32>, vector<16x32xf32> -> vector<16x32xf32>
    %c2_52 = arith.constant 2 : index
    %c0_53 = arith.constant 0 : index
    %c0_54 = arith.constant 0 : index
    %84 = vector.load %arg25[%c2_52, %c0_53, %c0_54] : memref<4x16x32xf32, #tpu.memory_space<vmem>>, vector<1x16x32xf32>
    %85 = vector.shape_cast %84 : vector<1x16x32xf32> to vector<16x32xf32>
    %86 = arith.mulf %83, %85 : vector<16x32xf32>
    %c2_55 = arith.constant 2 : index
    %c0_56 = arith.constant 0 : index
    %c0_57 = arith.constant 0 : index
    %87 = vector.load %arg3[%c2_55, %c0_56, %c0_57] : memref<4x32x32xf32, #tpu.memory_space<vmem>>, vector<1x32x32xf32>
    %88 = vector.shape_cast %87 : vector<1x32x32xf32> to vector<32x32xf32>
    %cst_58 = arith.constant dense<0.000000e+00> : vector<16x32xf32>
    %89 = tpu.matmul %86, %88, %cst_58 {dimension_numbers = #tpu.dot_dimension_numbers<[1], [0], [0], [1], [0, 0, 1, 1], [], []>} : vector<16x32xf32>, vector<32x32xf32>, vector<16x32xf32> -> vector<16x32xf32>
    %90 = arith.addf %80, %89 : vector<16x32xf32>
    %c3 = arith.constant 3 : index
    %c0_59 = arith.constant 0 : index
    %c0_60 = arith.constant 0 : index
    %91 = vector.load %arg24[%c3, %c0_59, %c0_60] : memref<4x16x16xf32, #tpu.memory_space<vmem>>, vector<1x16x16xf32>
    %92 = vector.shape_cast %91 : vector<1x16x16xf32> to vector<16x16xf32>
    %cst_61 = arith.constant dense<0.000000e+00> : vector<16x32xf32>
    %93 = tpu.matmul %92, %58, %cst_61 {dimension_numbers = #tpu.dot_dimension_numbers<[1], [0], [0], [1], [0, 0, 1, 1], [], []>} : vector<16x16xf32>, vector<16x32xf32>, vector<16x32xf32> -> vector<16x32xf32>
    %c3_62 = arith.constant 3 : index
    %c0_63 = arith.constant 0 : index
    %c0_64 = arith.constant 0 : index
    %94 = vector.load %arg25[%c3_62, %c0_63, %c0_64] : memref<4x16x32xf32, #tpu.memory_space<vmem>>, vector<1x16x32xf32>
    %95 = vector.shape_cast %94 : vector<1x16x32xf32> to vector<16x32xf32>
    %96 = arith.mulf %93, %95 : vector<16x32xf32>
    %c3_65 = arith.constant 3 : index
    %c0_66 = arith.constant 0 : index
    %c0_67 = arith.constant 0 : index
    %97 = vector.load %arg3[%c3_65, %c0_66, %c0_67] : memref<4x32x32xf32, #tpu.memory_space<vmem>>, vector<1x32x32xf32>
    %98 = vector.shape_cast %97 : vector<1x32x32xf32> to vector<32x32xf32>
    %cst_68 = arith.constant dense<0.000000e+00> : vector<16x32xf32>
    %99 = tpu.matmul %96, %98, %cst_68 {dimension_numbers = #tpu.dot_dimension_numbers<[1], [0], [0], [1], [0, 0, 1, 1], [], []>} : vector<16x32xf32>, vector<32x32xf32>, vector<16x32xf32> -> vector<16x32xf32>
    %100 = arith.addf %90, %99 : vector<16x32xf32>
    %101 = arith.addf %100, %0 : vector<16x32xf32>
    %c0_69 = arith.constant 0 : index
    %c0_70 = arith.constant 0 : index
    %102 = vector.load %arg5[%c0_69, %c0_70] : memref<1x32xf32, #tpu.memory_space<vmem>>, vector<1x32xf32>
    %c0_71 = arith.constant 0 : index
    %c0_72 = arith.constant 0 : index
    %103 = vector.load %arg6[%c0_71, %c0_72] : memref<1x32xf32, #tpu.memory_space<vmem>>, vector<1x32xf32>
    %cst_73 = arith.constant dense<0.000000e+00> : vector<16xf32>
    %104 = vector.multi_reduction <add>, %101, %cst_73 [1] : vector<16x32xf32> to vector<16xf32>
    %105 = vector.shape_cast %104 : vector<16xf32> to vector<16x1xf32>
    %cst_74 = arith.constant 3.200000e+01 : f32
    %106 = vector.broadcast %cst_74 : f32 to vector<16x1xf32>
    %107 = arith.divf %105, %106 : vector<16x1xf32>
    %108 = vector.broadcast %107 : vector<16x1xf32> to vector<16x32xf32>
    %109 = arith.subf %101, %108 : vector<16x32xf32>
    %110 = arith.mulf %109, %109 : vector<16x32xf32>
    %cst_75 = arith.constant dense<0.000000e+00> : vector<16xf32>
    %111 = vector.multi_reduction <add>, %110, %cst_75 [1] : vector<16x32xf32> to vector<16xf32>
    %112 = vector.shape_cast %111 : vector<16xf32> to vector<16x1xf32>
    %cst_76 = arith.constant 3.200000e+01 : f32
    %113 = vector.broadcast %cst_76 : f32 to vector<16x1xf32>
    %114 = arith.divf %112, %113 : vector<16x1xf32>
    %115 = vector.broadcast %107 : vector<16x1xf32> to vector<16x32xf32>
    %116 = arith.subf %101, %115 : vector<16x32xf32>
    %cst_77 = arith.constant 9.99999974E-6 : f32
    %117 = vector.broadcast %cst_77 : f32 to vector<16x1xf32>
    %118 = arith.addf %114, %117 : vector<16x1xf32>
    %119 = math.rsqrt %118 : vector<16x1xf32>
    %120 = vector.broadcast %119 : vector<16x1xf32> to vector<16x32xf32>
    %121 = arith.mulf %116, %120 : vector<16x32xf32>
    %122 = vector.broadcast %102 : vector<1x32xf32> to vector<16x32xf32>
    %123 = arith.mulf %121, %122 : vector<16x32xf32>
    %124 = vector.broadcast %103 : vector<1x32xf32> to vector<16x32xf32>
    %125 = arith.addf %123, %124 : vector<16x32xf32>
    %c0_78 = arith.constant 0 : index
    %c0_79 = arith.constant 0 : index
    %126 = vector.load %arg7[%c0_78, %c0_79] : memref<32x384xf32, #tpu.memory_space<vmem>>, vector<32x384xf32>
    %cst_80 = arith.constant dense<0.000000e+00> : vector<16x384xf32>
    %127 = tpu.matmul %125, %126, %cst_80 {dimension_numbers = #tpu.dot_dimension_numbers<[1], [0], [0], [1], [0, 0, 1, 1], [], []>} : vector<16x32xf32>, vector<32x384xf32>, vector<16x384xf32> -> vector<16x384xf32>
    %c0_81 = arith.constant 0 : index
    %c0_82 = arith.constant 0 : index
    %128 = vector.load %arg8[%c0_81, %c0_82] : memref<1x384xf32, #tpu.memory_space<vmem>>, vector<1x384xf32>
    %129 = vector.broadcast %128 : vector<1x384xf32> to vector<16x384xf32>
    %130 = arith.addf %127, %129 : vector<16x384xf32>
    %131 = vector.extract_strided_slice %130 {offsets = [0, 0], sizes = [16, 128], strides = [1, 1]} : vector<16x384xf32> to vector<16x128xf32>
    %132 = vector.extract_strided_slice %130 {offsets = [0, 128], sizes = [16, 128], strides = [1, 1]} : vector<16x384xf32> to vector<16x128xf32>
    %133 = vector.extract_strided_slice %130 {offsets = [0, 256], sizes = [16, 128], strides = [1, 1]} : vector<16x384xf32> to vector<16x128xf32>
    %134 = arith.mulf %131, %132 : vector<16x128xf32>
    %cst_83 = arith.constant dense<0.000000e+00> : vector<16x16xf32>
    %135 = tpu.matmul %134, %1, %cst_83 {dimension_numbers = #tpu.dot_dimension_numbers<[1], [0], [0], [1], [0, 0, 1, 1], [], []>} : vector<16x128xf32>, vector<128x16xf32>, vector<16x16xf32> -> vector<16x16xf32>
    %cst_84 = arith.constant 0.000000e+00 : f32
    %136 = vector.broadcast %cst_84 : f32 to vector<16x16xf32>
    %137 = vector.extract_strided_slice %135 {offsets = [0, 0], sizes = [16, 4], strides = [1, 1]} : vector<16x16xf32> to vector<16x4xf32>
    %cst_85 = arith.constant dense<0xFF800000> : vector<16xf32>
    %138 = vector.multi_reduction <maximumf>, %137, %cst_85 [1] : vector<16x4xf32> to vector<16xf32>
    %139 = vector.shape_cast %138 : vector<16xf32> to vector<16x1xf32>
    %140 = vector.extract_strided_slice %3 {offsets = [0, 0], sizes = [1, 16], strides = [1, 1]} : vector<4x16xf32> to vector<1x16xf32>
    %141 = vector.broadcast %139 : vector<16x1xf32> to vector<16x16xf32>
    %142 = vector.broadcast %140 : vector<1x16xf32> to vector<16x16xf32>
    %143 = arith.mulf %141, %142 : vector<16x16xf32>
    %144 = arith.addf %136, %143 : vector<16x16xf32>
    %145 = vector.extract_strided_slice %135 {offsets = [0, 4], sizes = [16, 4], strides = [1, 1]} : vector<16x16xf32> to vector<16x4xf32>
    %cst_86 = arith.constant dense<0xFF800000> : vector<16xf32>
    %146 = vector.multi_reduction <maximumf>, %145, %cst_86 [1] : vector<16x4xf32> to vector<16xf32>
    %147 = vector.shape_cast %146 : vector<16xf32> to vector<16x1xf32>
    %148 = vector.extract_strided_slice %3 {offsets = [1, 0], sizes = [1, 16], strides = [1, 1]} : vector<4x16xf32> to vector<1x16xf32>
    %149 = vector.broadcast %147 : vector<16x1xf32> to vector<16x16xf32>
    %150 = vector.broadcast %148 : vector<1x16xf32> to vector<16x16xf32>
    %151 = arith.mulf %149, %150 : vector<16x16xf32>
    %152 = arith.addf %144, %151 : vector<16x16xf32>
    %153 = vector.extract_strided_slice %135 {offsets = [0, 8], sizes = [16, 4], strides = [1, 1]} : vector<16x16xf32> to vector<16x4xf32>
    %cst_87 = arith.constant dense<0xFF800000> : vector<16xf32>
    %154 = vector.multi_reduction <maximumf>, %153, %cst_87 [1] : vector<16x4xf32> to vector<16xf32>
    %155 = vector.shape_cast %154 : vector<16xf32> to vector<16x1xf32>
    %156 = vector.extract_strided_slice %3 {offsets = [2, 0], sizes = [1, 16], strides = [1, 1]} : vector<4x16xf32> to vector<1x16xf32>
    %157 = vector.broadcast %155 : vector<16x1xf32> to vector<16x16xf32>
    %158 = vector.broadcast %156 : vector<1x16xf32> to vector<16x16xf32>
    %159 = arith.mulf %157, %158 : vector<16x16xf32>
    %160 = arith.addf %152, %159 : vector<16x16xf32>
    %161 = vector.extract_strided_slice %135 {offsets = [0, 12], sizes = [16, 4], strides = [1, 1]} : vector<16x16xf32> to vector<16x4xf32>
    %cst_88 = arith.constant dense<0xFF800000> : vector<16xf32>
    %162 = vector.multi_reduction <maximumf>, %161, %cst_88 [1] : vector<16x4xf32> to vector<16xf32>
    %163 = vector.shape_cast %162 : vector<16xf32> to vector<16x1xf32>
    %164 = vector.extract_strided_slice %3 {offsets = [3, 0], sizes = [1, 16], strides = [1, 1]} : vector<4x16xf32> to vector<1x16xf32>
    %165 = vector.broadcast %163 : vector<16x1xf32> to vector<16x16xf32>
    %166 = vector.broadcast %164 : vector<1x16xf32> to vector<16x16xf32>
    %167 = arith.mulf %165, %166 : vector<16x16xf32>
    %168 = arith.addf %160, %167 : vector<16x16xf32>
    %169 = arith.subf %135, %168 : vector<16x16xf32>
    %170 = math.exp %169 : vector<16x16xf32>
    %cst_89 = arith.constant dense<0.000000e+00> : vector<16x4xf32>
    %171 = tpu.matmul %170, %2, %cst_89 {dimension_numbers = #tpu.dot_dimension_numbers<[1], [0], [0], [1], [0, 0, 1, 1], [], []>} : vector<16x16xf32>, vector<16x4xf32>, vector<16x4xf32> -> vector<16x4xf32>
    %cst_90 = arith.constant 1.000000e+00 : f32
    %172 = vector.broadcast %cst_90 : f32 to vector<16x4xf32>
    %173 = arith.divf %172, %171 : vector<16x4xf32>
    %cst_91 = arith.constant dense<0.000000e+00> : vector<16x16xf32>
    %174 = tpu.matmul %173, %3, %cst_91 {dimension_numbers = #tpu.dot_dimension_numbers<[1], [0], [0], [1], [0, 0, 1, 1], [], []>} : vector<16x4xf32>, vector<4x16xf32>, vector<16x16xf32> -> vector<16x16xf32>
    %175 = arith.mulf %170, %174 : vector<16x16xf32>
    %cst_92 = arith.constant dense<0.000000e+00> : vector<16x128xf32>
    %176 = tpu.matmul %175, %4, %cst_92 {dimension_numbers = #tpu.dot_dimension_numbers<[1], [0], [0], [1], [0, 0, 1, 1], [], []>} : vector<16x16xf32>, vector<16x128xf32>, vector<16x128xf32> -> vector<16x128xf32>
    %177 = arith.mulf %176, %133 : vector<16x128xf32>
    %cst_93 = arith.constant dense<0.000000e+00> : vector<16x32xf32>
    %178 = tpu.matmul %177, %5, %cst_93 {dimension_numbers = #tpu.dot_dimension_numbers<[1], [0], [0], [1], [0, 0, 1, 1], [], []>} : vector<16x128xf32>, vector<128x32xf32>, vector<16x32xf32> -> vector<16x32xf32>
    %c0_94 = arith.constant 0 : index
    %c0_95 = arith.constant 0 : index
    %179 = vector.load %arg10[%c0_94, %c0_95] : memref<1x32xf32, #tpu.memory_space<vmem>>, vector<1x32xf32>
    %c0_96 = arith.constant 0 : index
    %c0_97 = arith.constant 0 : index
    %c0_98 = arith.constant 0 : index
    %180 = vector.load %arg24[%c0_96, %c0_97, %c0_98] : memref<4x16x16xf32, #tpu.memory_space<vmem>>, vector<1x16x16xf32>
    %181 = vector.shape_cast %180 : vector<1x16x16xf32> to vector<16x16xf32>
    %cst_99 = arith.constant dense<0.000000e+00> : vector<16x32xf32>
    %182 = tpu.matmul %181, %178, %cst_99 {dimension_numbers = #tpu.dot_dimension_numbers<[1], [0], [0], [1], [0, 0, 1, 1], [], []>} : vector<16x16xf32>, vector<16x32xf32>, vector<16x32xf32> -> vector<16x32xf32>
    %c0_100 = arith.constant 0 : index
    %c0_101 = arith.constant 0 : index
    %c0_102 = arith.constant 0 : index
    %183 = vector.load %arg25[%c0_100, %c0_101, %c0_102] : memref<4x16x32xf32, #tpu.memory_space<vmem>>, vector<1x16x32xf32>
    %184 = vector.shape_cast %183 : vector<1x16x32xf32> to vector<16x32xf32>
    %185 = arith.mulf %182, %184 : vector<16x32xf32>
    %c0_103 = arith.constant 0 : index
    %c0_104 = arith.constant 0 : index
    %c0_105 = arith.constant 0 : index
    %186 = vector.load %arg9[%c0_103, %c0_104, %c0_105] : memref<4x32x32xf32, #tpu.memory_space<vmem>>, vector<1x32x32xf32>
    %187 = vector.shape_cast %186 : vector<1x32x32xf32> to vector<32x32xf32>
    %cst_106 = arith.constant dense<0.000000e+00> : vector<16x32xf32>
    %188 = tpu.matmul %185, %187, %cst_106 {dimension_numbers = #tpu.dot_dimension_numbers<[1], [0], [0], [1], [0, 0, 1, 1], [], []>} : vector<16x32xf32>, vector<32x32xf32>, vector<16x32xf32> -> vector<16x32xf32>
    %189 = vector.broadcast %179 : vector<1x32xf32> to vector<16x32xf32>
    %190 = arith.addf %189, %188 : vector<16x32xf32>
    %c1_107 = arith.constant 1 : index
    %c0_108 = arith.constant 0 : index
    %c0_109 = arith.constant 0 : index
    %191 = vector.load %arg24[%c1_107, %c0_108, %c0_109] : memref<4x16x16xf32, #tpu.memory_space<vmem>>, vector<1x16x16xf32>
    %192 = vector.shape_cast %191 : vector<1x16x16xf32> to vector<16x16xf32>
    %cst_110 = arith.constant dense<0.000000e+00> : vector<16x32xf32>
    %193 = tpu.matmul %192, %178, %cst_110 {dimension_numbers = #tpu.dot_dimension_numbers<[1], [0], [0], [1], [0, 0, 1, 1], [], []>} : vector<16x16xf32>, vector<16x32xf32>, vector<16x32xf32> -> vector<16x32xf32>
    %c1_111 = arith.constant 1 : index
    %c0_112 = arith.constant 0 : index
    %c0_113 = arith.constant 0 : index
    %194 = vector.load %arg25[%c1_111, %c0_112, %c0_113] : memref<4x16x32xf32, #tpu.memory_space<vmem>>, vector<1x16x32xf32>
    %195 = vector.shape_cast %194 : vector<1x16x32xf32> to vector<16x32xf32>
    %196 = arith.mulf %193, %195 : vector<16x32xf32>
    %c1_114 = arith.constant 1 : index
    %c0_115 = arith.constant 0 : index
    %c0_116 = arith.constant 0 : index
    %197 = vector.load %arg9[%c1_114, %c0_115, %c0_116] : memref<4x32x32xf32, #tpu.memory_space<vmem>>, vector<1x32x32xf32>
    %198 = vector.shape_cast %197 : vector<1x32x32xf32> to vector<32x32xf32>
    %cst_117 = arith.constant dense<0.000000e+00> : vector<16x32xf32>
    %199 = tpu.matmul %196, %198, %cst_117 {dimension_numbers = #tpu.dot_dimension_numbers<[1], [0], [0], [1], [0, 0, 1, 1], [], []>} : vector<16x32xf32>, vector<32x32xf32>, vector<16x32xf32> -> vector<16x32xf32>
    %200 = arith.addf %190, %199 : vector<16x32xf32>
    %c2_118 = arith.constant 2 : index
    %c0_119 = arith.constant 0 : index
    %c0_120 = arith.constant 0 : index
    %201 = vector.load %arg24[%c2_118, %c0_119, %c0_120] : memref<4x16x16xf32, #tpu.memory_space<vmem>>, vector<1x16x16xf32>
    %202 = vector.shape_cast %201 : vector<1x16x16xf32> to vector<16x16xf32>
    %cst_121 = arith.constant dense<0.000000e+00> : vector<16x32xf32>
    %203 = tpu.matmul %202, %178, %cst_121 {dimension_numbers = #tpu.dot_dimension_numbers<[1], [0], [0], [1], [0, 0, 1, 1], [], []>} : vector<16x16xf32>, vector<16x32xf32>, vector<16x32xf32> -> vector<16x32xf32>
    %c2_122 = arith.constant 2 : index
    %c0_123 = arith.constant 0 : index
    %c0_124 = arith.constant 0 : index
    %204 = vector.load %arg25[%c2_122, %c0_123, %c0_124] : memref<4x16x32xf32, #tpu.memory_space<vmem>>, vector<1x16x32xf32>
    %205 = vector.shape_cast %204 : vector<1x16x32xf32> to vector<16x32xf32>
    %206 = arith.mulf %203, %205 : vector<16x32xf32>
    %c2_125 = arith.constant 2 : index
    %c0_126 = arith.constant 0 : index
    %c0_127 = arith.constant 0 : index
    %207 = vector.load %arg9[%c2_125, %c0_126, %c0_127] : memref<4x32x32xf32, #tpu.memory_space<vmem>>, vector<1x32x32xf32>
    %208 = vector.shape_cast %207 : vector<1x32x32xf32> to vector<32x32xf32>
    %cst_128 = arith.constant dense<0.000000e+00> : vector<16x32xf32>
    %209 = tpu.matmul %206, %208, %cst_128 {dimension_numbers = #tpu.dot_dimension_numbers<[1], [0], [0], [1], [0, 0, 1, 1], [], []>} : vector<16x32xf32>, vector<32x32xf32>, vector<16x32xf32> -> vector<16x32xf32>
    %210 = arith.addf %200, %209 : vector<16x32xf32>
    %c3_129 = arith.constant 3 : index
    %c0_130 = arith.constant 0 : index
    %c0_131 = arith.constant 0 : index
    %211 = vector.load %arg24[%c3_129, %c0_130, %c0_131] : memref<4x16x16xf32, #tpu.memory_space<vmem>>, vector<1x16x16xf32>
    %212 = vector.shape_cast %211 : vector<1x16x16xf32> to vector<16x16xf32>
    %cst_132 = arith.constant dense<0.000000e+00> : vector<16x32xf32>
    %213 = tpu.matmul %212, %178, %cst_132 {dimension_numbers = #tpu.dot_dimension_numbers<[1], [0], [0], [1], [0, 0, 1, 1], [], []>} : vector<16x16xf32>, vector<16x32xf32>, vector<16x32xf32> -> vector<16x32xf32>
    %c3_133 = arith.constant 3 : index
    %c0_134 = arith.constant 0 : index
    %c0_135 = arith.constant 0 : index
    %214 = vector.load %arg25[%c3_133, %c0_134, %c0_135] : memref<4x16x32xf32, #tpu.memory_space<vmem>>, vector<1x16x32xf32>
    %215 = vector.shape_cast %214 : vector<1x16x32xf32> to vector<16x32xf32>
    %216 = arith.mulf %213, %215 : vector<16x32xf32>
    %c3_136 = arith.constant 3 : index
    %c0_137 = arith.constant 0 : index
    %c0_138 = arith.constant 0 : index
    %217 = vector.load %arg9[%c3_136, %c0_137, %c0_138] : memref<4x32x32xf32, #tpu.memory_space<vmem>>, vector<1x32x32xf32>
    %218 = vector.shape_cast %217 : vector<1x32x32xf32> to vector<32x32xf32>
    %cst_139 = arith.constant dense<0.000000e+00> : vector<16x32xf32>
    %219 = tpu.matmul %216, %218, %cst_139 {dimension_numbers = #tpu.dot_dimension_numbers<[1], [0], [0], [1], [0, 0, 1, 1], [], []>} : vector<16x32xf32>, vector<32x32xf32>, vector<16x32xf32> -> vector<16x32xf32>
    %220 = arith.addf %210, %219 : vector<16x32xf32>
    %221 = arith.addf %220, %125 : vector<16x32xf32>
    %c0_140 = arith.constant 0 : index
    %c0_141 = arith.constant 0 : index
    %222 = vector.load %arg11[%c0_140, %c0_141] : memref<1x32xf32, #tpu.memory_space<vmem>>, vector<1x32xf32>
    %c0_142 = arith.constant 0 : index
    %c0_143 = arith.constant 0 : index
    %223 = vector.load %arg12[%c0_142, %c0_143] : memref<1x32xf32, #tpu.memory_space<vmem>>, vector<1x32xf32>
    %cst_144 = arith.constant dense<0.000000e+00> : vector<16xf32>
    %224 = vector.multi_reduction <add>, %221, %cst_144 [1] : vector<16x32xf32> to vector<16xf32>
    %225 = vector.shape_cast %224 : vector<16xf32> to vector<16x1xf32>
    %cst_145 = arith.constant 3.200000e+01 : f32
    %226 = vector.broadcast %cst_145 : f32 to vector<16x1xf32>
    %227 = arith.divf %225, %226 : vector<16x1xf32>
    %228 = vector.broadcast %227 : vector<16x1xf32> to vector<16x32xf32>
    %229 = arith.subf %221, %228 : vector<16x32xf32>
    %230 = arith.mulf %229, %229 : vector<16x32xf32>
    %cst_146 = arith.constant dense<0.000000e+00> : vector<16xf32>
    %231 = vector.multi_reduction <add>, %230, %cst_146 [1] : vector<16x32xf32> to vector<16xf32>
    %232 = vector.shape_cast %231 : vector<16xf32> to vector<16x1xf32>
    %cst_147 = arith.constant 3.200000e+01 : f32
    %233 = vector.broadcast %cst_147 : f32 to vector<16x1xf32>
    %234 = arith.divf %232, %233 : vector<16x1xf32>
    %235 = vector.broadcast %227 : vector<16x1xf32> to vector<16x32xf32>
    %236 = arith.subf %221, %235 : vector<16x32xf32>
    %cst_148 = arith.constant 9.99999974E-6 : f32
    %237 = vector.broadcast %cst_148 : f32 to vector<16x1xf32>
    %238 = arith.addf %234, %237 : vector<16x1xf32>
    %239 = math.rsqrt %238 : vector<16x1xf32>
    %240 = vector.broadcast %239 : vector<16x1xf32> to vector<16x32xf32>
    %241 = arith.mulf %236, %240 : vector<16x32xf32>
    %242 = vector.broadcast %222 : vector<1x32xf32> to vector<16x32xf32>
    %243 = arith.mulf %241, %242 : vector<16x32xf32>
    %244 = vector.broadcast %223 : vector<1x32xf32> to vector<16x32xf32>
    %245 = arith.addf %243, %244 : vector<16x32xf32>
    %c0_149 = arith.constant 0 : index
    %c0_150 = arith.constant 0 : index
    %246 = vector.load %arg13[%c0_149, %c0_150] : memref<32x64xf32, #tpu.memory_space<vmem>>, vector<32x64xf32>
    %cst_151 = arith.constant dense<0.000000e+00> : vector<16x64xf32>
    %247 = tpu.matmul %245, %246, %cst_151 {dimension_numbers = #tpu.dot_dimension_numbers<[1], [0], [0], [1], [0, 0, 1, 1], [], []>} : vector<16x32xf32>, vector<32x64xf32>, vector<16x64xf32> -> vector<16x64xf32>
    %c0_152 = arith.constant 0 : index
    %c0_153 = arith.constant 0 : index
    %248 = vector.load %arg14[%c0_152, %c0_153] : memref<1x64xf32, #tpu.memory_space<vmem>>, vector<1x64xf32>
    %249 = vector.broadcast %248 : vector<1x64xf32> to vector<16x64xf32>
    %250 = arith.addf %247, %249 : vector<16x64xf32>
    %cst_154 = arith.constant 0.000000e+00 : f32
    %251 = vector.broadcast %cst_154 : f32 to vector<16x64xf32>
    %252 = arith.maximumf %250, %251 : vector<16x64xf32>
    %c0_155 = arith.constant 0 : index
    %c0_156 = arith.constant 0 : index
    %253 = vector.load %arg15[%c0_155, %c0_156] : memref<64x32xf32, #tpu.memory_space<vmem>>, vector<64x32xf32>
    %cst_157 = arith.constant dense<0.000000e+00> : vector<16x32xf32>
    %254 = tpu.matmul %252, %253, %cst_157 {dimension_numbers = #tpu.dot_dimension_numbers<[1], [0], [0], [1], [0, 0, 1, 1], [], []>} : vector<16x64xf32>, vector<64x32xf32>, vector<16x32xf32> -> vector<16x32xf32>
    %c0_158 = arith.constant 0 : index
    %c0_159 = arith.constant 0 : index
    %255 = vector.load %arg16[%c0_158, %c0_159] : memref<1x32xf32, #tpu.memory_space<vmem>>, vector<1x32xf32>
    %256 = vector.broadcast %255 : vector<1x32xf32> to vector<16x32xf32>
    %257 = arith.addf %254, %256 : vector<16x32xf32>
    %258 = arith.addf %257, %245 : vector<16x32xf32>
    %c0_160 = arith.constant 0 : index
    %c0_161 = arith.constant 0 : index
    %259 = vector.load %arg17[%c0_160, %c0_161] : memref<1x32xf32, #tpu.memory_space<vmem>>, vector<1x32xf32>
    %c0_162 = arith.constant 0 : index
    %c0_163 = arith.constant 0 : index
    %260 = vector.load %arg18[%c0_162, %c0_163] : memref<1x32xf32, #tpu.memory_space<vmem>>, vector<1x32xf32>
    %cst_164 = arith.constant dense<0.000000e+00> : vector<16xf32>
    %261 = vector.multi_reduction <add>, %258, %cst_164 [1] : vector<16x32xf32> to vector<16xf32>
    %262 = vector.shape_cast %261 : vector<16xf32> to vector<16x1xf32>
    %cst_165 = arith.constant 3.200000e+01 : f32
    %263 = vector.broadcast %cst_165 : f32 to vector<16x1xf32>
    %264 = arith.divf %262, %263 : vector<16x1xf32>
    %265 = vector.broadcast %264 : vector<16x1xf32> to vector<16x32xf32>
    %266 = arith.subf %258, %265 : vector<16x32xf32>
    %267 = arith.mulf %266, %266 : vector<16x32xf32>
    %cst_166 = arith.constant dense<0.000000e+00> : vector<16xf32>
    %268 = vector.multi_reduction <add>, %267, %cst_166 [1] : vector<16x32xf32> to vector<16xf32>
    %269 = vector.shape_cast %268 : vector<16xf32> to vector<16x1xf32>
    %cst_167 = arith.constant 3.200000e+01 : f32
    %270 = vector.broadcast %cst_167 : f32 to vector<16x1xf32>
    %271 = arith.divf %269, %270 : vector<16x1xf32>
    %272 = vector.broadcast %264 : vector<16x1xf32> to vector<16x32xf32>
    %273 = arith.subf %258, %272 : vector<16x32xf32>
    %cst_168 = arith.constant 9.99999974E-6 : f32
    %274 = vector.broadcast %cst_168 : f32 to vector<16x1xf32>
    %275 = arith.addf %271, %274 : vector<16x1xf32>
    %276 = math.rsqrt %275 : vector<16x1xf32>
    %277 = vector.broadcast %276 : vector<16x1xf32> to vector<16x32xf32>
    %278 = arith.mulf %273, %277 : vector<16x32xf32>
    %279 = vector.broadcast %259 : vector<1x32xf32> to vector<16x32xf32>
    %280 = arith.mulf %278, %279 : vector<16x32xf32>
    %281 = vector.broadcast %260 : vector<1x32xf32> to vector<16x32xf32>
    %282 = arith.addf %280, %281 : vector<16x32xf32>
    %c0_169 = arith.constant 0 : index
    %c0_170 = arith.constant 0 : index
    %283 = vector.load %arg26[%c0_169, %c0_170] : memref<16x32xf32, #tpu.memory_space<vmem>>, vector<16x32xf32>
    tpu.vector_store %arg26[%c0_169, %c0_170], %282 {strides = array<i32>} : memref<16x32xf32, #tpu.memory_space<vmem>>, vector<16x32xf32>,
    return
  }
}

</mosaic_0001>

<llo_original>
// kernel: tpu_custom_call.1
$region0: #{tpu_custom_call.1}
  #allocation0 [shape = 'u32[]', space=smem, size = 0x4, offset = 0x4, fixed_abs, tag = 'smem constant byte address 0x4 - core index']
  #allocation1 [shape = 'u32[72,128]{1,0:T(1,128)}', space=vmem, size = 0x9000, scoped, tag = 'internal scratch']
  %s0 = inlined_call_operand.hbm [shape: f32[16,32], index: 0, kind: input, shape index: {}]
  %s1 = inlined_call_operand.vmem [shape: f32[32,384], index: 1, kind: input, shape index: {}]
  %s2 = inlined_call_operand.hbm [shape: f32[1,384], index: 2, kind: input, shape index: {}]
  %s3 = inlined_call_operand.vmem [shape: f32[4,32,32], index: 3, kind: input, shape index: {}]
  %s4 = inlined_call_operand.hbm [shape: f32[1,32], index: 4, kind: input, shape index: {}]
  %s5 = inlined_call_operand.hbm [shape: f32[1,32], index: 5, kind: input, shape index: {}]
  %s6 = inlined_call_operand.hbm [shape: f32[1,32], index: 6, kind: input, shape index: {}]
  %s7 = inlined_call_operand.hbm [shape: f32[32,384], index: 7, kind: input, shape index: {}]
  %s8 = inlined_call_operand.hbm [shape: f32[1,384], index: 8, kind: input, shape index: {}]
  %s9 = inlined_call_operand.vmem [shape: f32[4,32,32], index: 9, kind: input, shape index: {}]
  %s10 = inlined_call_operand.hbm [shape: f32[1,32], index: 10, kind: input, shape index: {}]
  %s11 = inlined_call_operand.hbm [shape: f32[1,32], index: 11, kind: input, shape index: {}]
  %s12 = inlined_call_operand.hbm [shape: f32[1,32], index: 12, kind: input, shape index: {}]
  %s13 = inlined_call_operand.hbm [shape: f32[32,64], index: 13, kind: input, shape index: {}]
  %s14 = inlined_call_operand.hbm [shape: f32[1,64], index: 14, kind: input, shape index: {}]
  %s15 = inlined_call_operand.vmem [shape: f32[64,32], index: 15, kind: input, shape index: {}]
  %s16 = inlined_call_operand.hbm [shape: f32[1,32], index: 16, kind: input, shape index: {}]
  %s17 = inlined_call_operand.hbm [shape: f32[1,32], index: 17, kind: input, shape index: {}]
  %s18 = inlined_call_operand.hbm [shape: f32[1,32], index: 18, kind: input, shape index: {}]
  %s19 = inlined_call_operand.vmem [shape: f32[128,16], index: 19, kind: input, shape index: {}]
  %s20 = inlined_call_operand.vmem [shape: f32[16,4], index: 20, kind: input, shape index: {}]
  %s21 = inlined_call_operand.hbm [shape: f32[4,16], index: 21, kind: input, shape index: {}]
  %s22 = inlined_call_operand.hbm [shape: f32[16,128], index: 22, kind: input, shape index: {}]
  %s23 = inlined_call_operand.vmem [shape: f32[128,32], index: 23, kind: input, shape index: {}]
  %s24 = inlined_call_operand.hbm [shape: f32[4,16,16], index: 24, kind: input, shape index: {}]
  %s25 = inlined_call_operand.hbm [shape: f32[4,16,32], index: 25, kind: input, shape index: {}]
  %s26 = inlined_call_operand.hbm [shape: f32[16,32], index: 26, kind: output, shape index: {}]
  %s27 = sld [smem:[#allocation0]]
  $region190: #{tpu_custom_call.1} parent=0
    _
  %s29 = ssub.s32 1, %s27
  %s30 = scalar_select 0, %s29, %s27
  $region1: #{tpu_custom_call.1} parent=0
    #allocation2 [shape = 'u8[8192]{0}', space=vmem, size = 0x2000, scoped, tag = 'input window, operand 0, single buffered']
    #allocation3 [shape = 's32[1]{0}', space=sflag, size = 0x4, scoped, tag = 'scoped memory for tpu_custom_call.1']
    #allocation4 [shape = 's32[1]{0}', space=sflag, size = 0x4, scoped, tag = 'scoped memory for tpu_custom_call.1']
    #allocation5 [shape = 'u8[1536]{0}', space=vmem, size = 0x800, scoped, tag = 'input window, operand 2, single buffered']
    #allocation6 [shape = 's32[1]{0}', space=sflag, size = 0x4, scoped, tag = 'scoped memory for tpu_custom_call.1']
    #allocation7 [shape = 'u8[512]{0}', space=vmem, size = 0x400, scoped, tag = 'input window, operand 4, single buffered']
    #allocation8 [shape = 'u8[512]{0}', space=vmem, size = 0x400, scoped, tag = 'input window, operand 5, single buffered']
    #allocation9 [shape = 's32[1]{0}', space=sflag, size = 0x4, scoped, tag = 'scoped memory for tpu_custom_call.1']
    #allocation10 [shape = 'u8[512]{0}', space=vmem, size = 0x400, scoped, tag = 'input window, operand 6, single buffered']
    #allocation11 [shape = 'u8[49152]{0}', space=vmem, size = 0xc000, scoped, tag = 'input window, operand 7, single buffered']
    #allocation12 [shape = 's32[1]{0}', space=sflag, size = 0x4, scoped, tag = 'scoped memory for tpu_custom_call.1']
    #allocation13 [shape = 'u8[1536]{0}', space=vmem, size = 0x800, scoped, tag = 'input window, operand 8, single buffered']
    #allocation14 [shape = 'u8[512]{0}', space=vmem, size = 0x400, scoped, tag = 'input window, operand 10, single buffered']
    #allocation15 [shape = 's32[1]{0}', space=sflag, size = 0x4, scoped, tag = 'scoped memory for tpu_custom_call.1']
    #allocation16 [shape = 'u8[512]{0}', space=vmem, size = 0x400, scoped, tag = 'input window, operand 11, single buffered']
    #allocation17 [shape = 'u8[512]{0}', space=vmem, size = 0x400, scoped, tag = 'input window, operand 12, single buffered']
    #allocation18 [shape = 's32[1]{0}', space=sflag, size = 0x4, scoped, tag = 'scoped memory for tpu_custom_call.1']
    #allocation19 [shape = 'u8[16384]{0}', space=vmem, size = 0x4000, scoped, tag = 'input window, operand 13, single buffered']
    #allocation20 [shape = 'u8[512]{0}', space=vmem, size = 0x400, scoped, tag = 'input window, operand 14, single buffered']
    #allocation21 [shape = 's32[1]{0}', space=sflag, size = 0x4, scoped, tag = 'scoped memory for tpu_custom_call.1']
    #allocation22 [shape = 'u8[512]{0}', space=vmem, size = 0x400, scoped, tag = 'input window, operand 16, single buffered']
    #allocation23 [shape = 'u8[512]{0}', space=vmem, size = 0x400, scoped, tag = 'input window, operand 17, single buffered']
    #allocation24 [shape = 's32[1]{0}', space=sflag, size = 0x4, scoped, tag = 'scoped memory for tpu_custom_call.1']
    #allocation25 [shape = 'u8[512]{0}', space=vmem, size = 0x400, scoped, tag = 'input window, operand 18, single buffered']
    #allocation26 [shape = 'u8[2048]{0}', space=vmem, size = 0x800, scoped, tag = 'input window, operand 21, single buffered']
    #allocation27 [shape = 's32[1]{0}', space=sflag, size = 0x4, scoped, tag = 'scoped memory for tpu_custom_call.1']
    #allocation28 [shape = 'u8[8192]{0}', space=vmem, size = 0x2000, scoped, tag = 'input window, operand 22, single buffered']
    #allocation29 [shape = 'u8[32768]{0}', space=vmem, size = 0x8000, scoped, tag = 'input window, operand 24, single buffered']
    #allocation30 [shape = 's32[1]{0}', space=sflag, size = 0x4, scoped, tag = 'scoped memory for tpu_custom_call.1']
    #allocation31 [shape = 'u8[32768]{0}', space=vmem, size = 0x8000, scoped, tag = 'input window, operand 25, single buffered']
    #allocation32 [shape = 'u8[8192]{0}', space=vmem, size = 0x2000, scoped, tag = 'output window, operand 0, single buffered']
    %31 = vsyncpa [#allocation3], 0
    %32 = vsyncpa [#allocation6], 0
    %33 = vsyncpa [#allocation9], 0
    %34 = vsyncpa [#allocation12], 0
    %35 = vsyncpa [#allocation15], 0
    %36 = vsyncpa [#allocation18], 0
    %37 = vsyncpa [#allocation21], 0
    %38 = vsyncpa [#allocation24], 0
    %39 = vsyncpa [#allocation27], 0
    %40 = vsyncpa [#allocation30], 0
    %41 = vsyncpa [#allocation4], 0
    // Predicated region
    $region2: #{tpu_custom_call.1} parent=1 // pred_check
      _
    $region3: #{tpu_custom_call.1} parent=1 // pred_check_branch
      %43 = sbr.rel (0) target = $region5
    $region4: #{tpu_custom_call.1} parent=1 // pred_region
      %45 = vsyncadd [#allocation3], 0
      %s46 = sshll.u32 %s0, 4
      %s47 = int_to_ptr.hbm [resolvable:$true] %s46
      %s48 = sshll.u32 [#allocation2], 4
      %s49 = int_to_ptr.vmem [resolvable:$true] %s48
      %54 = dma.hbm_to_vmem [thread:$0]  %s47, 256, %s49, [#allocation3], 128, 128, 8
    $region5: #{tpu_custom_call.1} parent=1 // pred_fallthru
      _
    // Predicated region
    $region6: #{tpu_custom_call.1} parent=1 // pred_check
      _
    $region7: #{tpu_custom_call.1} parent=1 // pred_check_branch
      %56 = sbr.rel (0) target = $region9
    $region8: #{tpu_custom_call.1} parent=1 // pred_region
      _
    $region9: #{tpu_custom_call.1} parent=1 // pred_fallthru
      _
    // Predicated region
    $region10: #{tpu_custom_call.1} parent=1 // pred_check
      _
    $region11: #{tpu_custom_call.1} parent=1 // pred_check_branch
      %58 = sbr.rel (0) target = $region13
    $region12: #{tpu_custom_call.1} parent=1 // pred_region
      %60 = vsyncadd [#allocation6], 0
      %s62 = sshll.u32 %s2, 4
      %s63 = int_to_ptr.hbm [resolvable:$true] %s62
      %s64 = sshll.u32 [#allocation5], 4
      %s65 = int_to_ptr.vmem [resolvable:$true] %s64
      %67 = dma.hbm_to_vmem [thread:$0]  %s63, 48, %s65, [#allocation6]
    $region13: #{tpu_custom_call.1} parent=1 // pred_fallthru
      _
    // Predicated region
    $region14: #{tpu_custom_call.1} parent=1 // pred_check
      _
    $region15: #{tpu_custom_call.1} parent=1 // pred_check_branch
      %69 = sbr.rel (0) target = $region17
    $region16: #{tpu_custom_call.1} parent=1 // pred_region
      _
    $region17: #{tpu_custom_call.1} parent=1 // pred_fallthru
      _
    // Predicated region
    $region18: #{tpu_custom_call.1} parent=1 // pred_check
      _
    $region19: #{tpu_custom_call.1} parent=1 // pred_check_branch
      %71 = sbr.rel (0) target = $region21
    $region20: #{tpu_custom_call.1} parent=1 // pred_region
      %73 = vsyncadd [#allocation6], 0
      %s75 = sshll.u32 %s4, 4
      %s76 = int_to_ptr.hbm [resolvable:$true] %s75
      %s77 = sshll.u32 [#allocation7], 4
      %s78 = int_to_ptr.vmem [resolvable:$true] %s77
      %80 = dma.hbm_to_vmem [thread:$0]  %s76, 16, %s78, [#allocation6]
    $region21: #{tpu_custom_call.1} parent=1 // pred_fallthru
      _
    // Predicated region
    $region22: #{tpu_custom_call.1} parent=1 // pred_check
      _
    $region23: #{tpu_custom_call.1} parent=1 // pred_check_branch
      %82 = sbr.rel (0) target = $region25
    $region24: #{tpu_custom_call.1} parent=1 // pred_region
      %84 = vsyncadd [#allocation9], 0
      %s86 = sshll.u32 %s5, 4
      %s87 = int_to_ptr.hbm [resolvable:$true] %s86
      %s88 = sshll.u32 [#allocation8], 4
      %s89 = int_to_ptr.vmem [resolvable:$true] %s88
      %91 = dma.hbm_to_vmem [thread:$0]  %s87, 16, %s89, [#allocation9]
    $region25: #{tpu_custom_call.1} parent=1 // pred_fallthru
      _
    // Predicated region
    $region26: #{tpu_custom_call.1} parent=1 // pred_check
      _
    $region27: #{tpu_custom_call.1} parent=1 // pred_check_branch
      %93 = sbr.rel (0) target = $region29
    $region28: #{tpu_custom_call.1} parent=1 // pred_region
      %95 = vsyncadd [#allocation9], 0
      %s97 = sshll.u32 %s6, 4
      %s98 = int_to_ptr.hbm [resolvable:$true] %s97
      %s99 = sshll.u32 [#allocation10], 4
      %s100 = int_to_ptr.vmem [resolvable:$true] %s99
      %102 = dma.hbm_to_vmem [thread:$0]  %s98, 16, %s100, [#allocation9]
    $region29: #{tpu_custom_call.1} parent=1 // pred_fallthru
      _
    // Predicated region
    $region30: #{tpu_custom_call.1} parent=1 // pred_check
      _
    $region31: #{tpu_custom_call.1} parent=1 // pred_check_branch
      %104 = sbr.rel (0) target = $region33
    $region32: #{tpu_custom_call.1} parent=1 // pred_region
      %106 = vsyncadd [#allocation12], 0
      %s107 = sshll.u32 %s7, 4
      %s108 = int_to_ptr.hbm [resolvable:$true] %s107
      %s109 = sshll.u32 [#allocation11], 4
      %s110 = int_to_ptr.vmem [resolvable:$true] %s109
      %115 = dma.hbm_to_vmem [thread:$0]  %s108, 1536, %s110, [#allocation12], 384, 384, 24
    $region33: #{tpu_custom_call.1} parent=1 // pred_fallthru
      _
    // Predicated region
    $region34: #{tpu_custom_call.1} parent=1 // pred_check
      _
    $region35: #{tpu_custom_call.1} parent=1 // pred_check_branch
      %117 = sbr.rel (0) target = $region37
    $region36: #{tpu_custom_call.1} parent=1 // pred_region
      %119 = vsyncadd [#allocation12], 0
      %s121 = sshll.u32 %s8, 4
      %s122 = int_to_ptr.hbm [resolvable:$true] %s121
      %s123 = sshll.u32 [#allocation13], 4
      %s124 = int_to_ptr.vmem [resolvable:$true] %s123
      %126 = dma.hbm_to_vmem [thread:$0]  %s122, 48, %s124, [#allocation12]
    $region37: #{tpu_custom_call.1} parent=1 // pred_fallthru
      _
    // Predicated region
    $region38: #{tpu_custom_call.1} parent=1 // pred_check
      _
    $region39: #{tpu_custom_call.1} parent=1 // pred_check_branch
      %128 = sbr.rel (0) target = $region41
    $region40: #{tpu_custom_call.1} parent=1 // pred_region
      _
    $region41: #{tpu_custom_call.1} parent=1 // pred_fallthru
      _
    // Predicated region
    $region42: #{tpu_custom_call.1} parent=1 // pred_check
      _
    $region43: #{tpu_custom_call.1} parent=1 // pred_check_branch
      %130 = sbr.rel (0) target = $region45
    $region44: #{tpu_custom_call.1} parent=1 // pred_region
      %132 = vsyncadd [#allocation15], 0
      %s134 = sshll.u32 %s10, 4
      %s135 = int_to_ptr.hbm [resolvable:$true] %s134
      %s136 = sshll.u32 [#allocation14], 4
      %s137 = int_to_ptr.vmem [resolvable:$true] %s136
      %139 = dma.hbm_to_vmem [thread:$0]  %s135, 16, %s137, [#allocation15]
    $region45: #{tpu_custom_call.1} parent=1 // pred_fallthru
      _
    // Predicated region
    $region46: #{tpu_custom_call.1} parent=1 // pred_check
      _
    $region47: #{tpu_custom_call.1} parent=1 // pred_check_branch
      %141 = sbr.rel (0) target = $region49
    $region48: #{tpu_custom_call.1} parent=1 // pred_region
      %143 = vsyncadd [#allocation15], 0
      %s145 = sshll.u32 %s11, 4
      %s146 = int_to_ptr.hbm [resolvable:$true] %s145
      %s147 = sshll.u32 [#allocation16], 4
      %s148 = int_to_ptr.vmem [resolvable:$true] %s147
      %150 = dma.hbm_to_vmem [thread:$0]  %s146, 16, %s148, [#allocation15]
    $region49: #{tpu_custom_call.1} parent=1 // pred_fallthru
      _
    // Predicated region
    $region50: #{tpu_custom_call.1} parent=1 // pred_check
      _
    $region51: #{tpu_custom_call.1} parent=1 // pred_check_branch
      %152 = sbr.rel (0) target = $region53
    $region52: #{tpu_custom_call.1} parent=1 // pred_region
      %154 = vsyncadd [#allocation18], 0
      %s156 = sshll.u32 %s12, 4
      %s157 = int_to_ptr.hbm [resolvable:$true] %s156
      %s158 = sshll.u32 [#allocation17], 4
      %s159 = int_to_ptr.vmem [resolvable:$true] %s158
      %161 = dma.hbm_to_vmem [thread:$0]  %s157, 16, %s159, [#allocation18]
    $region53: #{tpu_custom_call.1} parent=1 // pred_fallthru
      _
    // Predicated region
    $region54: #{tpu_custom_call.1} parent=1 // pred_check
      _
    $region55: #{tpu_custom_call.1} parent=1 // pred_check_branch
      %163 = sbr.rel (0) target = $region57
    $region56: #{tpu_custom_call.1} parent=1 // pred_region
      %165 = vsyncadd [#allocation18], 0
      %s166 = sshll.u32 %s13, 4
      %s167 = int_to_ptr.hbm [resolvable:$true] %s166
      %s168 = sshll.u32 [#allocation19], 4
      %s169 = int_to_ptr.vmem [resolvable:$true] %s168
      %174 = dma.hbm_to_vmem [thread:$0]  %s167, 512, %s169, [#allocation18], 128, 128, 8
    $region57: #{tpu_custom_call.1} parent=1 // pred_fallthru
      _
    // Predicated region
    $region58: #{tpu_custom_call.1} parent=1 // pred_check
      _
    $region59: #{tpu_custom_call.1} parent=1 // pred_check_branch
      %176 = sbr.rel (0) target = $region61
    $region60: #{tpu_custom_call.1} parent=1 // pred_region
      %178 = vsyncadd [#allocation21], 0
      %s180 = sshll.u32 %s14, 4
      %s181 = int_to_ptr.hbm [resolvable:$true] %s180
      %s182 = sshll.u32 [#allocation20], 4
      %s183 = int_to_ptr.vmem [resolvable:$true] %s182
      %185 = dma.hbm_to_vmem [thread:$0]  %s181, 16, %s183, [#allocation21]
    $region61: #{tpu_custom_call.1} parent=1 // pred_fallthru
      _
    // Predicated region
    $region62: #{tpu_custom_call.1} parent=1 // pred_check
      _
    $region63: #{tpu_custom_call.1} parent=1 // pred_check_branch
      %187 = sbr.rel (0) target = $region65
    $region64: #{tpu_custom_call.1} parent=1 // pred_region
      _
    $region65: #{tpu_custom_call.1} parent=1 // pred_fallthru
      _
    // Predicated region
    $region66: #{tpu_custom_call.1} parent=1 // pred_check
      _
    $region67: #{tpu_custom_call.1} parent=1 // pred_check_branch
      %189 = sbr.rel (0) target = $region69
    $region68: #{tpu_custom_call.1} parent=1 // pred_region
      %191 = vsyncadd [#allocation21], 0
      %s193 = sshll.u32 %s16, 4
      %s194 = int_to_ptr.hbm [resolvable:$true] %s193
      %s195 = sshll.u32 [#allocation22], 4
      %s196 = int_to_ptr.vmem [resolvable:$true] %s195
      %198 = dma.hbm_to_vmem [thread:$0]  %s194, 16, %s196, [#allocation21]
    $region69: #{tpu_custom_call.1} parent=1 // pred_fallthru
      _
    // Predicated region
    $region70: #{tpu_custom_call.1} parent=1 // pred_check
      _
    $region71: #{tpu_custom_call.1} parent=1 // pred_check_branch
      %200 = sbr.rel (0) target = $region73
    $region72: #{tpu_custom_call.1} parent=1 // pred_region
      %202 = vsyncadd [#allocation24], 0
      %s204 = sshll.u32 %s17, 4
      %s205 = int_to_ptr.hbm [resolvable:$true] %s204
      %s206 = sshll.u32 [#allocation23], 4
      %s207 = int_to_ptr.vmem [resolvable:$true] %s206
      %209 = dma.hbm_to_vmem [thread:$0]  %s205, 16, %s207, [#allocation24]
    $region73: #{tpu_custom_call.1} parent=1 // pred_fallthru
      _
    // Predicated region
    $region74: #{tpu_custom_call.1} parent=1 // pred_check
      _
    $region75: #{tpu_custom_call.1} parent=1 // pred_check_branch
      %211 = sbr.rel (0) target = $region77
    $region76: #{tpu_custom_call.1} parent=1 // pred_region
      %213 = vsyncadd [#allocation24], 0
      %s215 = sshll.u32 %s18, 4
      %s216 = int_to_ptr.hbm [resolvable:$true] %s215
      %s217 = sshll.u32 [#allocation25], 4
      %s218 = int_to_ptr.vmem [resolvable:$true] %s217
      %220 = dma.hbm_to_vmem [thread:$0]  %s216, 16, %s218, [#allocation24]
    $region77: #{tpu_custom_call.1} parent=1 // pred_fallthru
      _
    // Predicated region
    $region78: #{tpu_custom_call.1} parent=1 // pred_check
      _
    $region79: #{tpu_custom_call.1} parent=1 // pred_check_branch
      %222 = sbr.rel (0) target = $region81
    $region80: #{tpu_custom_call.1} parent=1 // pred_region
      _
    $region81: #{tpu_custom_call.1} parent=1 // pred_fallthru
      _
    // Predicated region
    $region82: #{tpu_custom_call.1} parent=1 // pred_check
      _
    $region83: #{tpu_custom_call.1} parent=1 // pred_check_branch
      %224 = sbr.rel (0) target = $region85
    $region84: #{tpu_custom_call.1} parent=1 // pred_region
      _
    $region85: #{tpu_custom_call.1} parent=1 // pred_fallthru
      _
    // Predicated region
    $region86: #{tpu_custom_call.1} parent=1 // pred_check
      _
    $region87: #{tpu_custom_call.1} parent=1 // pred_check_branch
      %226 = sbr.rel (0) target = $region89
    $region88: #{tpu_custom_call.1} parent=1 // pred_region
      %228 = vsyncadd [#allocation27], 0
      %s230 = sshll.u32 %s21, 4
      %s231 = int_to_ptr.hbm [resolvable:$true] %s230
      %s232 = sshll.u32 [#allocation26], 4
      %s233 = int_to_ptr.vmem [resolvable:$true] %s232
      %235 = dma.hbm_to_vmem [thread:$0]  %s231, 64, %s233, [#allocation27]
    $region89: #{tpu_custom_call.1} parent=1 // pred_fallthru
      _
    // Predicated region
    $region90: #{tpu_custom_call.1} parent=1 // pred_check
      _
    $region91: #{tpu_custom_call.1} parent=1 // pred_check_branch
      %237 = sbr.rel (0) target = $region93
    $region92: #{tpu_custom_call.1} parent=1 // pred_region
      %239 = vsyncadd [#allocation27], 0
      %s240 = sshll.u32 %s22, 4
      %s241 = int_to_ptr.hbm [resolvable:$true] %s240
      %s242 = sshll.u32 [#allocation28], 4
      %s243 = int_to_ptr.vmem [resolvable:$true] %s242
      %248 = dma.hbm_to_vmem [thread:$0]  %s241, 256, %s243, [#allocation27], 128, 128, 8
    $region93: #{tpu_custom_call.1} parent=1 // pred_fallthru
      _
    // Predicated region
    $region94: #{tpu_custom_call.1} parent=1 // pred_check
      _
    $region95: #{tpu_custom_call.1} parent=1 // pred_check_branch
      %250 = sbr.rel (0) target = $region97
    $region96: #{tpu_custom_call.1} parent=1 // pred_region
      _
    $region97: #{tpu_custom_call.1} parent=1 // pred_fallthru
      _
    // Predicated region
    $region98: #{tpu_custom_call.1} parent=1 // pred_check
      _
    $region99: #{tpu_custom_call.1} parent=1 // pred_check_branch
      %252 = sbr.rel (0) target = $region101
    $region100: #{tpu_custom_call.1} parent=1 // pred_region
      %254 = vsyncadd [#allocation30], 0
      %s255 = sshll.u32 %s24, 4
      %s256 = int_to_ptr.hbm [resolvable:$true] %s255
      %s257 = sshll.u32 [#allocation29], 4
      %s258 = int_to_ptr.vmem [resolvable:$true] %s257
      %263 = dma.hbm_to_vmem [thread:$0]  %s256, 1024, %s258, [#allocation30], 128, 128, 8
    $region101: #{tpu_custom_call.1} parent=1 // pred_fallthru
      _
    // Predicated region
    $region102: #{tpu_custom_call.1} parent=1 // pred_check
      _
    $region103: #{tpu_custom_call.1} parent=1 // pred_check_branch
      %265 = sbr.rel (0) target = $region105
    $region104: #{tpu_custom_call.1} parent=1 // pred_region
      %267 = vsyncadd [#allocation30], 0
      %s268 = sshll.u32 %s25, 4
      %s269 = int_to_ptr.hbm [resolvable:$true] %s268
      %s270 = sshll.u32 [#allocation31], 4
      %s271 = int_to_ptr.vmem [resolvable:$true] %s270
      %276 = dma.hbm_to_vmem [thread:$0]  %s269, 1024, %s271, [#allocation30], 128, 128, 8
    $region105: #{tpu_custom_call.1} parent=1 // pred_fallthru
      _
    // Predicated region
    $region106: #{tpu_custom_call.1} parent=1 // pred_check
      _
    $region107: #{tpu_custom_call.1} parent=1 // pred_check_branch
      %278 = sbr.rel (0) target = $region109
    $region108: #{tpu_custom_call.1} parent=1 // pred_region
      %280 = dma.done [#allocation3], 256
    $region109: #{tpu_custom_call.1} parent=1 // pred_fallthru
      _
    // Predicated region
    $region110: #{tpu_custom_call.1} parent=1 // pred_check
      _
    $region111: #{tpu_custom_call.1} parent=1 // pred_check_branch
      %282 = sbr.rel (0) target = $region113
    $region112: #{tpu_custom_call.1} parent=1 // pred_region
      %284 = dma.done [#allocation6], 48
    $region113: #{tpu_custom_call.1} parent=1 // pred_fallthru
      _
    // Predicated region
    $region114: #{tpu_custom_call.1} parent=1 // pred_check
      _
    $region115: #{tpu_custom_call.1} parent=1 // pred_check_branch
      %286 = sbr.rel (0) target = $region117
    $region116: #{tpu_custom_call.1} parent=1 // pred_region
      %288 = dma.done [#allocation6], 16
    $region117: #{tpu_custom_call.1} parent=1 // pred_fallthru
      _
    // Predicated region
    $region118: #{tpu_custom_call.1} parent=1 // pred_check
      _
    $region119: #{tpu_custom_call.1} parent=1 // pred_check_branch
      %290 = sbr.rel (0) target = $region121
    $region120: #{tpu_custom_call.1} parent=1 // pred_region
      %292 = dma.done [#allocation9], 16
    $region121: #{tpu_custom_call.1} parent=1 // pred_fallthru
      _
    // Predicated region
    $region122: #{tpu_custom_call.1} parent=1 // pred_check
      _
    $region123: #{tpu_custom_call.1} parent=1 // pred_check_branch
      %294 = sbr.rel (0) target = $region125
    $region124: #{tpu_custom_call.1} parent=1 // pred_region
      %296 = dma.done [#allocation9], 16
    $region125: #{tpu_custom_call.1} parent=1 // pred_fallthru
      _
    // Predicated region
    $region126: #{tpu_custom_call.1} parent=1 // pred_check
      _
    $region127: #{tpu_custom_call.1} parent=1 // pred_check_branch
      %298 = sbr.rel (0) target = $region129
    $region128: #{tpu_custom_call.1} parent=1 // pred_region
      %300 = dma.done [#allocation12], 1536
    $region129: #{tpu_custom_call.1} parent=1 // pred_fallthru
      _
    // Predicated region
    $region130: #{tpu_custom_call.1} parent=1 // pred_check
      _
    $region131: #{tpu_custom_call.1} parent=1 // pred_check_branch
      %302 = sbr.rel (0) target = $region133
    $region132: #{tpu_custom_call.1} parent=1 // pred_region
      %304 = dma.done [#allocation12], 48
    $region133: #{tpu_custom_call.1} parent=1 // pred_fallthru
      _
    // Predicated region
    $region134: #{tpu_custom_call.1} parent=1 // pred_check
      _
    $region135: #{tpu_custom_call.1} parent=1 // pred_check_branch
      %306 = sbr.rel (0) target = $region137
    $region136: #{tpu_custom_call.1} parent=1 // pred_region
      %308 = dma.done [#allocation15], 16
    $region137: #{tpu_custom_call.1} parent=1 // pred_fallthru
      _
    // Predicated region
    $region138: #{tpu_custom_call.1} parent=1 // pred_check
      _
    $region139: #{tpu_custom_call.1} parent=1 // pred_check_branch
      %310 = sbr.rel (0) target = $region141
    $region140: #{tpu_custom_call.1} parent=1 // pred_region
      %312 = dma.done [#allocation15], 16
    $region141: #{tpu_custom_call.1} parent=1 // pred_fallthru
      _
    // Predicated region
    $region142: #{tpu_custom_call.1} parent=1 // pred_check
      _
    $region143: #{tpu_custom_call.1} parent=1 // pred_check_branch
      %314 = sbr.rel (0) target = $region145
    $region144: #{tpu_custom_call.1} parent=1 // pred_region
      %316 = dma.done [#allocation18], 16
    $region145: #{tpu_custom_call.1} parent=1 // pred_fallthru
      _
    // Predicated region
    $region146: #{tpu_custom_call.1} parent=1 // pred_check
      _
    $region147: #{tpu_custom_call.1} parent=1 // pred_check_branch
      %318 = sbr.rel (0) target = $region149
    $region148: #{tpu_custom_call.1} parent=1 // pred_region
      %320 = dma.done [#allocation18], 512
    $region149: #{tpu_custom_call.1} parent=1 // pred_fallthru
      _
    // Predicated region
    $region150: #{tpu_custom_call.1} parent=1 // pred_check
      _
    $region151: #{tpu_custom_call.1} parent=1 // pred_check_branch
      %322 = sbr.rel (0) target = $region153
    $region152: #{tpu_custom_call.1} parent=1 // pred_region
      %324 = dma.done [#allocation21], 16
    $region153: #{tpu_custom_call.1} parent=1 // pred_fallthru
      _
    // Predicated region
    $region154: #{tpu_custom_call.1} parent=1 // pred_check
      _
    $region155: #{tpu_custom_call.1} parent=1 // pred_check_branch
      %326 = sbr.rel (0) target = $region157
    $region156: #{tpu_custom_call.1} parent=1 // pred_region
      %328 = dma.done [#allocation21], 16
    $region157: #{tpu_custom_call.1} parent=1 // pred_fallthru
      _
    // Predicated region
    $region158: #{tpu_custom_call.1} parent=1 // pred_check
      _
    $region159: #{tpu_custom_call.1} parent=1 // pred_check_branch
      %330 = sbr.rel (0) target = $region161
    $region160: #{tpu_custom_call.1} parent=1 // pred_region
      %332 = dma.done [#allocation24], 16
    $region161: #{tpu_custom_call.1} parent=1 // pred_fallthru
      _
    // Predicated region
    $region162: #{tpu_custom_call.1} parent=1 // pred_check
      _
    $region163: #{tpu_custom_call.1} parent=1 // pred_check_branch
      %334 = sbr.rel (0) target = $region165
    $region164: #{tpu_custom_call.1} parent=1 // pred_region
      %336 = dma.done [#allocation24], 16
    $region165: #{tpu_custom_call.1} parent=1 // pred_fallthru
      _
    // Predicated region
    $region166: #{tpu_custom_call.1} parent=1 // pred_check
      _
    $region167: #{tpu_custom_call.1} parent=1 // pred_check_branch
      %338 = sbr.rel (0) target = $region169
    $region168: #{tpu_custom_call.1} parent=1 // pred_region
      %340 = dma.done [#allocation27], 64
    $region169: #{tpu_custom_call.1} parent=1 // pred_fallthru
      _
    // Predicated region
    $region170: #{tpu_custom_call.1} parent=1 // pred_check
      _
    $region171: #{tpu_custom_call.1} parent=1 // pred_check_branch
      %342 = sbr.rel (0) target = $region173
    $region172: #{tpu_custom_call.1} parent=1 // pred_region
      %344 = dma.done [#allocation27], 256
    $region173: #{tpu_custom_call.1} parent=1 // pred_fallthru
      _
    // Predicated region
    $region174: #{tpu_custom_call.1} parent=1 // pred_check
      _
    $region175: #{tpu_custom_call.1} parent=1 // pred_check_branch
      %346 = sbr.rel (0) target = $region177
    $region176: #{tpu_custom_call.1} parent=1 // pred_region
      %348 = dma.done [#allocation30], 1024
    $region177: #{tpu_custom_call.1} parent=1 // pred_fallthru
      _
    // Predicated region
    $region178: #{tpu_custom_call.1} parent=1 // pred_check
      _
    $region179: #{tpu_custom_call.1} parent=1 // pred_check_branch
      %350 = sbr.rel (0) target = $region181
    $region180: #{tpu_custom_call.1} parent=1 // pred_region
      %352 = dma.done [#allocation30], 1024
    $region181: #{tpu_custom_call.1} parent=1 // pred_fallthru
      _
    %v353 = vld [vmem:[#allocation2] sm:$0xff]
    %v354 = vld [vmem:[#allocation2 + $0x8] sm:$0xff]
    %v355 = vld [vmem:[%s19] sm:$0xff]
    %v356 = vld [vmem:[%s19 + $0x8] sm:$0xff]
    %v357 = vld [vmem:[%s19 + $0x10] sm:$0xff]
    %v358 = vld [vmem:[%s19 + $0x18] sm:$0xff]
    %v359 = vld [vmem:[%s19 + $0x20] sm:$0xff]
    %v360 = vld [vmem:[%s19 + $0x28] sm:$0xff]
    %v361 = vld [vmem:[%s19 + $0x30] sm:$0xff]
    %v362 = vld [vmem:[%s19 + $0x38] sm:$0xff]
    %v363 = vld [vmem:[%s19 + $0x40] sm:$0xff]
    %v364 = vld [vmem:[%s19 + $0x48] sm:$0xff]
    %v365 = vld [vmem:[%s19 + $0x50] sm:$0xff]
    %v366 = vld [vmem:[%s19 + $0x58] sm:$0xff]
    %v367 = vld [vmem:[%s19 + $0x60] sm:$0xff]
    %v368 = vld [vmem:[%s19 + $0x68] sm:$0xff]
    %v369 = vld [vmem:[%s19 + $0x70] sm:$0xff]
    %v370 = vld [vmem:[%s19 + $0x78] sm:$0xff]
    %v371 = vld [vmem:[%s20] sm:$0xff]
    %v372 = vld [vmem:[%s20 + $0x8] sm:$0xff]
    %v373 = vld [vmem:[#allocation26] sm:$0xf]
    %v374 = vld [vmem:[#allocation28] sm:$0xff]
    %v375 = vld [vmem:[#allocation28 + $0x8] sm:$0xff]
    %v376 = vld [vmem:[%s23] sm:$0xff]
    %v377 = vld [vmem:[%s23 + $0x8] sm:$0xff]
    %v378 = vld [vmem:[%s23 + $0x10] sm:$0xff]
    %v379 = vld [vmem:[%s23 + $0x18] sm:$0xff]
    %v380 = vld [vmem:[%s23 + $0x20] sm:$0xff]
    %v381 = vld [vmem:[%s23 + $0x28] sm:$0xff]
    %v382 = vld [vmem:[%s23 + $0x30] sm:$0xff]
    %v383 = vld [vmem:[%s23 + $0x38] sm:$0xff]
    %v384 = vld [vmem:[%s23 + $0x40] sm:$0xff]
    %v385 = vld [vmem:[%s23 + $0x48] sm:$0xff]
    %v386 = vld [vmem:[%s23 + $0x50] sm:$0xff]
    %v387 = vld [vmem:[%s23 + $0x58] sm:$0xff]
    %v388 = vld [vmem:[%s23 + $0x60] sm:$0xff]
    %v389 = vld [vmem:[%s23 + $0x68] sm:$0xff]
    %v390 = vld [vmem:[%s23 + $0x70] sm:$0xff]
    %v391 = vld [vmem:[%s23 + $0x78] sm:$0xff]
    %v392 = vld [vmem:[%s1] sm:$0xff]
    %v393 = vld [vmem:[%s1 + $0x8] sm:$0xff]
    %v394 = vld [vmem:[%s1 + $0x10] sm:$0xff]
    %v395 = vld [vmem:[%s1 + $0x18] sm:$0xff]
    %v396 = vld [vmem:[%s1 + $0x20] sm:$0xff]
    %v397 = vld [vmem:[%s1 + $0x28] sm:$0xff]
    %v398 = vld [vmem:[%s1 + $0x30] sm:$0xff]
    %v399 = vld [vmem:[%s1 + $0x38] sm:$0xff]
    %v400 = vld [vmem:[%s1 + $0x40] sm:$0xff]
    %v401 = vld [vmem:[%s1 + $0x48] sm:$0xff]
    %v402 = vld [vmem:[%s1 + $0x50] sm:$0xff]
    %v403 = vld [vmem:[%s1 + $0x58] sm:$0xff]
    %v404 = vld [vmem:[#allocation5] sm:$0x7]
    %v406 = vperm.slane %v404, 0
    %v407 = vperm.slane %v404, 1
    %v408 = vperm.slane %v404, 2
    %vm412 = vcmask 261120
    %v414 = vsel %vm412, %v353, 0
    %v417 = vsel %vm412, %v354, 0
    %419 = vmatpush.msra.mxu0 0.0
    %420 = vmatpush.msra.mxu0 0.0
    %421 = vmatpush.msra.mxu0 0.0
    %422 = vmatpush.msra.mxu0 0.0
    %423 = vmatpush.msra.mxu0 0.0
    %424 = vmatpush.msra.mxu0 0.0
    %425 = vmatpush.msra.mxu0 0.0
    %426 = vmatpush.msra.mxu0 0.0
    %427 = vmatpush.msra.mxu0 0.0
    %428 = vmatpush.msra.mxu0 0.0
    %429 = vmatpush.msra.mxu0 0.0
    %430 = vmatpush.msra.mxu0 0.0
    %431 = vmatpush.msra.mxu0 %v401
    %432 = vmatpush.msra.mxu0 %v398
    %433 = vmatpush.msra.mxu0 %v395
    %434 = vmatpush.msra.mxu0 %v392
    %435 = vmatmul.f32.gmra.mxu0 %v414
    %v436 = vpop.f32.mrf.mxu0
    %v437 = vadd.f32 %v406, %v436
    %438 = vmatmul.f32.gmra.mxu0 %v417
    %v439 = vpop.f32.mrf.mxu0
    %v440 = vadd.f32 %v406, %v439
    %441 = vdwg.mxu0
    %442 = vmatpush.msra.mxu0 0.0
    %443 = vmatpush.msra.mxu0 0.0
    %444 = vmatpush.msra.mxu0 0.0
    %445 = vmatpush.msra.mxu0 0.0
    %446 = vmatpush.msra.mxu0 0.0
    %447 = vmatpush.msra.mxu0 0.0
    %448 = vmatpush.msra.mxu0 0.0
    %449 = vmatpush.msra.mxu0 0.0
    %450 = vmatpush.msra.mxu0 0.0
    %451 = vmatpush.msra.mxu0 0.0
    %452 = vmatpush.msra.mxu0 0.0
    %453 = vmatpush.msra.mxu0 0.0
    %454 = vmatpush.msra.mxu0 %v402
    %455 = vmatpush.msra.mxu0 %v399
    %456 = vmatpush.msra.mxu0 %v396
    %457 = vmatpush.msra.mxu0 %v393
    %458 = vmatmul.f32.gmra.mxu0 %v414
    %v459 = vpop.f32.mrf.mxu0
    %v460 = vadd.f32 %v407, %v459
    %461 = vmatmul.f32.gmra.mxu0 %v417
    %v462 = vpop.f32.mrf.mxu0
    %v463 = vadd.f32 %v407, %v462
    %464 = vdwg.mxu0
    %465 = vmatpush.msra.mxu0 0.0
    %466 = vmatpush.msra.mxu0 0.0
    %467 = vmatpush.msra.mxu0 0.0
    %468 = vmatpush.msra.mxu0 0.0
    %469 = vmatpush.msra.mxu0 0.0
    %470 = vmatpush.msra.mxu0 0.0
    %471 = vmatpush.msra.mxu0 0.0
    %472 = vmatpush.msra.mxu0 0.0
    %473 = vmatpush.msra.mxu0 0.0
    %474 = vmatpush.msra.mxu0 0.0
    %475 = vmatpush.msra.mxu0 0.0
    %476 = vmatpush.msra.mxu0 0.0
    %477 = vmatpush.msra.mxu0 %v403
    %478 = vmatpush.msra.mxu0 %v400
    %479 = vmatpush.msra.mxu0 %v397
    %480 = vmatpush.msra.mxu0 %v394
    %481 = vmatmul.f32.gmra.mxu0 %v414
    %v482 = vpop.f32.mrf.mxu0
    %v483 = vadd.f32 %v408, %v482
    %484 = vmatmul.f32.gmra.mxu0 %v417
    %v485 = vpop.f32.mrf.mxu0
    %v486 = vadd.f32 %v408, %v485
    %487 = vdwg.mxu0
    %v488 = vmul.f32 %v437, %v460
    %v489 = vmul.f32 %v440, %v463
    %490 = vmatpush.msra.mxu0 %v370
    %491 = vmatpush.msra.mxu0 %v369
    %492 = vmatpush.msra.mxu0 %v368
    %493 = vmatpush.msra.mxu0 %v367
    %494 = vmatpush.msra.mxu0 %v366
    %495 = vmatpush.msra.mxu0 %v365
    %496 = vmatpush.msra.mxu0 %v364
    %497 = vmatpush.msra.mxu0 %v363
    %498 = vmatpush.msra.mxu0 %v362
    %499 = vmatpush.msra.mxu0 %v361
    %500 = vmatpush.msra.mxu0 %v360
    %501 = vmatpush.msra.mxu0 %v359
    %502 = vmatpush.msra.mxu0 %v358
    %503 = vmatpush.msra.mxu0 %v357
    %504 = vmatpush.msra.mxu0 %v356
    %505 = vmatpush.msra.mxu0 %v355
    %506 = vmatmul.f32.gmra.mxu0 %v488
    %v507 = vpop.f32.mrf.mxu0
    %v508 = vadd.f32 0.0, %v507
    %509 = vmatmul.f32.gmra.mxu0 %v489
    %v510 = vpop.f32.mrf.mxu0
    %v511 = vadd.f32 0.0, %v510
    %512 = vdwg.mxu0
    %vm513 = vcmask 31744
    %v514 = vsel %vm513, %v508, -inf
    %515 = vmax.xlane.f32.xlu0 %v514
    %v516 = vpop.xlane.xlu0 %515
    %v517 = vsel %vm513, %v511, -inf
    %518 = vmax.xlane.f32.xlu0 %v517
    %v519 = vpop.xlane.xlu0 %518
    %v520 = vperm.slane %v373, 0
    %v521 = vmul.f32 %v516, %v520
    %v522 = vmul.f32 %v519, %v520
    %v523 = vadd.f32 %v521, 0.0
    %v524 = vadd.f32 %v522, 0.0
    %vm525 = vcmask 64544
    %v526 = vsel %vm525, %v508, -inf
    %527 = vmax.xlane.f32.xlu0 %v526
    %v528 = vpop.xlane.xlu0 %527
    %v529 = vsel %vm525, %v511, -inf
    %530 = vmax.xlane.f32.xlu0 %v529
    %v531 = vpop.xlane.xlu0 %530
    %v532 = vperm.slane %v373, 1
    %v533 = vmul.f32 %v528, %v532
    %v534 = vmul.f32 %v531, %v532
    %v535 = vadd.f32 %v523, %v533
    %v536 = vadd.f32 %v524, %v534
    %vm537 = vcmask 97344
    %v538 = vsel %vm537, %v508, -inf
    %539 = vmax.xlane.f32.xlu0 %v538
    %v540 = vpop.xlane.xlu0 %539
    %v541 = vsel %vm537, %v511, -inf
    %542 = vmax.xlane.f32.xlu0 %v541
    %v543 = vpop.xlane.xlu0 %542
    %v544 = vperm.slane %v373, 2
    %v545 = vmul.f32 %v540, %v544
    %v546 = vmul.f32 %v543, %v544
    %v547 = vadd.f32 %v535, %v545
    %v548 = vadd.f32 %v536, %v546
    %vm549 = vcmask 130144
    %v550 = vsel %vm549, %v508, -inf
    %551 = vmax.xlane.f32.xlu0 %v550
    %v552 = vpop.xlane.xlu0 %551
    %v553 = vsel %vm549, %v511, -inf
    %554 = vmax.xlane.f32.xlu0 %v553
    %v555 = vpop.xlane.xlu0 %554
    %v556 = vperm.slane %v373, 3
    %v557 = vmul.f32 %v552, %v556
    %v558 = vmul.f32 %v555, %v556
    %v559 = vadd.f32 %v547, %v557
    %v560 = vadd.f32 %v548, %v558
    %v561 = vsub.f32 %v508, %v559
    %v562 = vsub.f32 %v511, %v560
    %v563 = vmul.f32 %v561, 1.442695
    %v564 = vpow.pop %v563
    %v565 = vmul.f32 %v562, 1.442695
    %v566 = vpow.pop %v565
    %vm567 = vcmask 130048
    %v569 = vsel %vm567, %v564, 0
    %v572 = vsel %vm567, %v566, 0
    %574 = vmatpush.msra.mxu0 0.0
    %575 = vmatpush.msra.mxu0 0.0
    %576 = vmatpush.msra.mxu0 0.0
    %577 = vmatpush.msra.mxu0 0.0
    %578 = vmatpush.msra.mxu0 0.0
    %579 = vmatpush.msra.mxu0 0.0
    %580 = vmatpush.msra.mxu0 0.0
    %581 = vmatpush.msra.mxu0 0.0
    %582 = vmatpush.msra.mxu0 0.0
    %583 = vmatpush.msra.mxu0 0.0
    %584 = vmatpush.msra.mxu0 0.0
    %585 = vmatpush.msra.mxu0 0.0
    %586 = vmatpush.msra.mxu0 0.0
    %587 = vmatpush.msra.mxu0 0.0
    %588 = vmatpush.msra.mxu0 %v372
    %589 = vmatpush.msra.mxu0 %v371
    %590 = vmatmul.f32.gmra.mxu0 %v569
    %v591 = vpop.f32.mrf.mxu0
    %v592 = vadd.f32 0.0, %v591
    %593 = vmatmul.f32.gmra.mxu0 %v572
    %v594 = vpop.f32.mrf.mxu0
    %v595 = vadd.f32 0.0, %v594
    %596 = vdwg.mxu0
    %v597 = vrcp.pop %v592
    %v598 = vmul.f32 %v592, %v597
    %v599 = vsub.f32 1.0, %v598
    %v600 = vmul.f32 %v597, %v599
    %v601 = vadd.f32 %v597, %v600
    %vm602 = vweird.f32 %v592
    %vm603 = vweird.f32 %v597
    %vm604 = vmor %vm602, %vm603
    %v605 = vsel %vm604, %v597, %v601
    %v606 = vand.u32 2147483647, %v592
    %vm607 = vcmp.eq.f32.partialorder %v606, 8.507059e+37
    %v608 = vand.u32 %v592, 2147483648
    %v609 = vor.u32 1.1754944e-38, %v608
    %v610 = vsel %vm607, %v609, %v605
    %v611 = vmul.f32 1.0, %v610
    %v612 = vrcp.pop %v595
    %v613 = vmul.f32 %v595, %v612
    %v614 = vsub.f32 1.0, %v613
    %v615 = vmul.f32 %v612, %v614
    %v616 = vadd.f32 %v612, %v615
    %vm617 = vweird.f32 %v595
    %vm618 = vweird.f32 %v612
    %vm619 = vmor %vm617, %vm618
    %v620 = vsel %vm619, %v612, %v616
    %v621 = vand.u32 2147483647, %v595
    %vm622 = vcmp.eq.f32.partialorder %v621, 8.507059e+37
    %v623 = vand.u32 %v595, 2147483648
    %v624 = vor.u32 1.1754944e-38, %v623
    %v625 = vsel %vm622, %v624, %v620
    %v626 = vmul.f32 1.0, %v625
    %v628 = vsel %vm513, %v611, 0
    %v631 = vsel %vm513, %v626, 0
    %vm633 = vcmask 1043456
    %v635 = vsel %vm633, %v373, 0
    %637 = vmatpush.msra.mxu0 0.0
    %638 = vmatpush.msra.mxu0 0.0
    %639 = vmatpush.msra.mxu0 0.0
    %640 = vmatpush.msra.mxu0 0.0
    %641 = vmatpush.msra.mxu0 0.0
    %642 = vmatpush.msra.mxu0 0.0
    %643 = vmatpush.msra.mxu0 0.0
    %644 = vmatpush.msra.mxu0 0.0
    %645 = vmatpush.msra.mxu0 0.0
    %646 = vmatpush.msra.mxu0 0.0
    %647 = vmatpush.msra.mxu0 0.0
    %648 = vmatpush.msra.mxu0 0.0
    %649 = vmatpush.msra.mxu0 0.0
    %650 = vmatpush.msra.mxu0 0.0
    %651 = vmatpush.msra.mxu0 0.0
    %652 = vmatpush.msra.mxu0 %v635
    %653 = vmatmul.f32.gmra.mxu0 %v628
    %v654 = vpop.f32.mrf.mxu0
    %v655 = vadd.f32 0.0, %v654
    %656 = vmatmul.f32.gmra.mxu0 %v631
    %v657 = vpop.f32.mrf.mxu0
    %v658 = vadd.f32 0.0, %v657
    %659 = vdwg.mxu0
    %v660 = vmul.f32 %v564, %v655
    %v661 = vmul.f32 %v566, %v658
    %v663 = vsel %vm567, %v660, 0
    %v666 = vsel %vm567, %v661, 0
    %668 = vmatpush.msra.mxu0 0.0
    %669 = vmatpush.msra.mxu0 0.0
    %670 = vmatpush.msra.mxu0 0.0
    %671 = vmatpush.msra.mxu0 0.0
    %672 = vmatpush.msra.mxu0 0.0
    %673 = vmatpush.msra.mxu0 0.0
    %674 = vmatpush.msra.mxu0 0.0
    %675 = vmatpush.msra.mxu0 0.0
    %676 = vmatpush.msra.mxu0 0.0
    %677 = vmatpush.msra.mxu0 0.0
    %678 = vmatpush.msra.mxu0 0.0
    %679 = vmatpush.msra.mxu0 0.0
    %680 = vmatpush.msra.mxu0 0.0
    %681 = vmatpush.msra.mxu0 0.0
    %682 = vmatpush.msra.mxu0 %v375
    %683 = vmatpush.msra.mxu0 %v374
    %684 = vmatmul.f32.gmra.mxu0 %v663
    %v685 = vpop.f32.mrf.mxu0
    %v686 = vadd.f32 0.0, %v685
    %687 = vmatmul.f32.gmra.mxu0 %v666
    %v688 = vpop.f32.mrf.mxu0
    %v689 = vadd.f32 0.0, %v688
    %690 = vdwg.mxu0
    %v691 = vmul.f32 %v686, %v483
    %v692 = vmul.f32 %v689, %v486
    %693 = vmatpush.msra.mxu0 %v391
    %694 = vmatpush.msra.mxu0 %v390
    %695 = vmatpush.msra.mxu0 %v389
    %696 = vmatpush.msra.mxu0 %v388
    %697 = vmatpush.msra.mxu0 %v387
    %698 = vmatpush.msra.mxu0 %v386
    %699 = vmatpush.msra.mxu0 %v385
    %700 = vmatpush.msra.mxu0 %v384
    %701 = vmatpush.msra.mxu0 %v383
    %702 = vmatpush.msra.mxu0 %v382
    %703 = vmatpush.msra.mxu0 %v381
    %704 = vmatpush.msra.mxu0 %v380
    %705 = vmatpush.msra.mxu0 %v379
    %706 = vmatpush.msra.mxu0 %v378
    %707 = vmatpush.msra.mxu0 %v377
    %708 = vmatpush.msra.mxu0 %v376
    %709 = vmatmul.f32.gmra.mxu0 %v691
    %v710 = vpop.f32.mrf.mxu0
    %v711 = vadd.f32 0.0, %v710
    %712 = vmatmul.f32.gmra.mxu0 %v692
    %v713 = vpop.f32.mrf.mxu0
    %v714 = vadd.f32 0.0, %v713
    %715 = vdwg.mxu0
    %v716 = vld [vmem:[#allocation7] sm:$0x1]
    %v717 = vld [vmem:[#allocation29] sm:$0xff]
    %v718 = vld [vmem:[#allocation29 + $0x8] sm:$0xff]
    %v720 = vsel %vm567, %v717, 0
    %v723 = vsel %vm567, %v718, 0
    %725 = vmatpush.msra.mxu0 0.0
    %726 = vmatpush.msra.mxu0 0.0
    %727 = vmatpush.msra.mxu0 0.0
    %728 = vmatpush.msra.mxu0 0.0
    %729 = vmatpush.msra.mxu0 0.0
    %730 = vmatpush.msra.mxu0 0.0
    %731 = vmatpush.msra.mxu0 0.0
    %732 = vmatpush.msra.mxu0 0.0
    %733 = vmatpush.msra.mxu0 0.0
    %734 = vmatpush.msra.mxu0 0.0
    %735 = vmatpush.msra.mxu0 0.0
    %736 = vmatpush.msra.mxu0 0.0
    %737 = vmatpush.msra.mxu0 0.0
    %738 = vmatpush.msra.mxu0 0.0
    %739 = vmatpush.msra.mxu0 %v714
    %740 = vmatpush.msra.mxu0 %v711
    %741 = vmatmul.f32.gmra.mxu0 %v720
    %v742 = vpop.f32.mrf.mxu0
    %v743 = vadd.f32 0.0, %v742
    %744 = vmatmul.f32.gmra.mxu0 %v723
    %v745 = vpop.f32.mrf.mxu0
    %v746 = vadd.f32 0.0, %v745
    %747 = vdwg.mxu0
    %v748 = vld [vmem:[#allocation31] sm:$0xff]
    %v749 = vld [vmem:[#allocation31 + $0x8] sm:$0xff]
    %v750 = vmul.f32 %v743, %v748
    %v751 = vmul.f32 %v746, %v749
    %v752 = vld [vmem:[%s3] sm:$0xff]
    %v753 = vld [vmem:[%s3 + $0x8] sm:$0xff]
    %v754 = vld [vmem:[%s3 + $0x10] sm:$0xff]
    %v755 = vld [vmem:[%s3 + $0x18] sm:$0xff]
    %v757 = vsel %vm412, %v750, 0
    %v760 = vsel %vm412, %v751, 0
    %762 = vmatpush.msra.mxu0 0.0
    %763 = vmatpush.msra.mxu0 0.0
    %764 = vmatpush.msra.mxu0 0.0
    %765 = vmatpush.msra.mxu0 0.0
    %766 = vmatpush.msra.mxu0 0.0
    %767 = vmatpush.msra.mxu0 0.0
    %768 = vmatpush.msra.mxu0 0.0
    %769 = vmatpush.msra.mxu0 0.0
    %770 = vmatpush.msra.mxu0 0.0
    %771 = vmatpush.msra.mxu0 0.0
    %772 = vmatpush.msra.mxu0 0.0
    %773 = vmatpush.msra.mxu0 0.0
    %774 = vmatpush.msra.mxu0 %v755
    %775 = vmatpush.msra.mxu0 %v754
    %776 = vmatpush.msra.mxu0 %v753
    %777 = vmatpush.msra.mxu0 %v752
    %778 = vmatmul.f32.gmra.mxu0 %v757
    %v779 = vpop.f32.mrf.mxu0
    %v780 = vadd.f32 0.0, %v779
    %781 = vmatmul.f32.gmra.mxu0 %v760
    %v782 = vpop.f32.mrf.mxu0
    %v783 = vadd.f32 0.0, %v782
    %784 = vdwg.mxu0
    %v786 = vperm.slane %v716, 0
    %v788 = vadd.f32 %v786, %v780
    %v789 = vadd.f32 %v786, %v783
    %s790 = scalar_lea.vmem [#allocation29], 16
    %v791 = vld [vmem:[%s790] sm:$0xff]
    %v792 = vld [vmem:[%s790 + $0x8] sm:$0xff]
    %v794 = vsel %vm567, %v791, 0
    %v797 = vsel %vm567, %v792, 0
    %799 = vmatpush.msra.mxu0 0.0
    %800 = vmatpush.msra.mxu0 0.0
    %801 = vmatpush.msra.mxu0 0.0
    %802 = vmatpush.msra.mxu0 0.0
    %803 = vmatpush.msra.mxu0 0.0
    %804 = vmatpush.msra.mxu0 0.0
    %805 = vmatpush.msra.mxu0 0.0
    %806 = vmatpush.msra.mxu0 0.0
    %807 = vmatpush.msra.mxu0 0.0
    %808 = vmatpush.msra.mxu0 0.0
    %809 = vmatpush.msra.mxu0 0.0
    %810 = vmatpush.msra.mxu0 0.0
    %811 = vmatpush.msra.mxu0 0.0
    %812 = vmatpush.msra.mxu0 0.0
    %813 = vmatpush.msra.mxu0 %v714
    %814 = vmatpush.msra.mxu0 %v711
    %815 = vmatmul.f32.gmra.mxu0 %v794
    %v816 = vpop.f32.mrf.mxu0
    %v817 = vadd.f32 0.0, %v816
    %818 = vmatmul.f32.gmra.mxu0 %v797
    %v819 = vpop.f32.mrf.mxu0
    %v820 = vadd.f32 0.0, %v819
    %821 = vdwg.mxu0
    %s822 = scalar_lea.vmem [#allocation31], 16
    %v823 = vld [vmem:[%s822] sm:$0xff]
    %v824 = vld [vmem:[%s822 + $0x8] sm:$0xff]
    %v825 = vmul.f32 %v817, %v823
    %v826 = vmul.f32 %v820, %v824
    %s827 = scalar_lea.vmem %s3, 32
    %v828 = vld [vmem:[%s827] sm:$0xff]
    %v829 = vld [vmem:[%s827 + $0x8] sm:$0xff]
    %v830 = vld [vmem:[%s827 + $0x10] sm:$0xff]
    %v831 = vld [vmem:[%s827 + $0x18] sm:$0xff]
    %v833 = vsel %vm412, %v825, 0
    %v836 = vsel %vm412, %v826, 0
    %838 = vmatpush.msra.mxu0 0.0
    %839 = vmatpush.msra.mxu0 0.0
    %840 = vmatpush.msra.mxu0 0.0
    %841 = vmatpush.msra.mxu0 0.0
    %842 = vmatpush.msra.mxu0 0.0
    %843 = vmatpush.msra.mxu0 0.0
    %844 = vmatpush.msra.mxu0 0.0
    %845 = vmatpush.msra.mxu0 0.0
    %846 = vmatpush.msra.mxu0 0.0
    %847 = vmatpush.msra.mxu0 0.0
    %848 = vmatpush.msra.mxu0 0.0
    %849 = vmatpush.msra.mxu0 0.0
    %850 = vmatpush.msra.mxu0 %v831
    %851 = vmatpush.msra.mxu0 %v830
    %852 = vmatpush.msra.mxu0 %v829
    %853 = vmatpush.msra.mxu0 %v828
    %854 = vmatmul.f32.gmra.mxu0 %v833
    %v855 = vpop.f32.mrf.mxu0
    %v856 = vadd.f32 0.0, %v855
    %857 = vmatmul.f32.gmra.mxu0 %v836
    %v858 = vpop.f32.mrf.mxu0
    %v859 = vadd.f32 0.0, %v858
    %860 = vdwg.mxu0
    %v861 = vadd.f32 %v788, %v856
    %v862 = vadd.f32 %v789, %v859
    %s863 = scalar_lea.vmem [#allocation29], 32
    %v864 = vld [vmem:[%s863] sm:$0xff]
    %v865 = vld [vmem:[%s863 + $0x8] sm:$0xff]
    %v867 = vsel %vm567, %v864, 0
    %v870 = vsel %vm567, %v865, 0
    %872 = vmatpush.msra.mxu0 0.0
    %873 = vmatpush.msra.mxu0 0.0
    %874 = vmatpush.msra.mxu0 0.0
    %875 = vmatpush.msra.mxu0 0.0
    %876 = vmatpush.msra.mxu0 0.0
    %877 = vmatpush.msra.mxu0 0.0
    %878 = vmatpush.msra.mxu0 0.0
    %879 = vmatpush.msra.mxu0 0.0
    %880 = vmatpush.msra.mxu0 0.0
    %881 = vmatpush.msra.mxu0 0.0
    %882 = vmatpush.msra.mxu0 0.0
    %883 = vmatpush.msra.mxu0 0.0
    %884 = vmatpush.msra.mxu0 0.0
    %885 = vmatpush.msra.mxu0 0.0
    %886 = vmatpush.msra.mxu0 %v714
    %887 = vmatpush.msra.mxu0 %v711
    %888 = vmatmul.f32.gmra.mxu0 %v867
    %v889 = vpop.f32.mrf.mxu0
    %v890 = vadd.f32 0.0, %v889
    %891 = vmatmul.f32.gmra.mxu0 %v870
    %v892 = vpop.f32.mrf.mxu0
    %v893 = vadd.f32 0.0, %v892
    %894 = vdwg.mxu0
    %s895 = scalar_lea.vmem [#allocation31], 32
    %v896 = vld [vmem:[%s895] sm:$0xff]
    %v897 = vld [vmem:[%s895 + $0x8] sm:$0xff]
    %v898 = vmul.f32 %v890, %v896
    %v899 = vmul.f32 %v893, %v897
    %s900 = scalar_lea.vmem %s3, 64
    %v901 = vld [vmem:[%s900] sm:$0xff]
    %v902 = vld [vmem:[%s900 + $0x8] sm:$0xff]
    %v903 = vld [vmem:[%s900 + $0x10] sm:$0xff]
    %v904 = vld [vmem:[%s900 + $0x18] sm:$0xff]
    %v906 = vsel %vm412, %v898, 0
    %v909 = vsel %vm412, %v899, 0
    %911 = vmatpush.msra.mxu0 0.0
    %912 = vmatpush.msra.mxu0 0.0
    %913 = vmatpush.msra.mxu0 0.0
    %914 = vmatpush.msra.mxu0 0.0
    %915 = vmatpush.msra.mxu0 0.0
    %916 = vmatpush.msra.mxu0 0.0
    %917 = vmatpush.msra.mxu0 0.0
    %918 = vmatpush.msra.mxu0 0.0
    %919 = vmatpush.msra.mxu0 0.0
    %920 = vmatpush.msra.mxu0 0.0
    %921 = vmatpush.msra.mxu0 0.0
    %922 = vmatpush.msra.mxu0 0.0
    %923 = vmatpush.msra.mxu0 %v904
    %924 = vmatpush.msra.mxu0 %v903
    %925 = vmatpush.msra.mxu0 %v902
    %926 = vmatpush.msra.mxu0 %v901
    %927 = vmatmul.f32.gmra.mxu0 %v906
    %v928 = vpop.f32.mrf.mxu0
    %v929 = vadd.f32 0.0, %v928
    %930 = vmatmul.f32.gmra.mxu0 %v909
    %v931 = vpop.f32.mrf.mxu0
    %v932 = vadd.f32 0.0, %v931
    %933 = vdwg.mxu0
    %v934 = vadd.f32 %v861, %v929
    %v935 = vadd.f32 %v862, %v932
    %s936 = scalar_lea.vmem [#allocation29], 48
    %v937 = vld [vmem:[%s936] sm:$0xff]
    %v938 = vld [vmem:[%s936 + $0x8] sm:$0xff]
    %v940 = vsel %vm567, %v937, 0
    %v943 = vsel %vm567, %v938, 0
    %945 = vmatpush.msra.mxu0 0.0
    %946 = vmatpush.msra.mxu0 0.0
    %947 = vmatpush.msra.mxu0 0.0
    %948 = vmatpush.msra.mxu0 0.0
    %949 = vmatpush.msra.mxu0 0.0
    %950 = vmatpush.msra.mxu0 0.0
    %951 = vmatpush.msra.mxu0 0.0
    %952 = vmatpush.msra.mxu0 0.0
    %953 = vmatpush.msra.mxu0 0.0
    %954 = vmatpush.msra.mxu0 0.0
    %955 = vmatpush.msra.mxu0 0.0
    %956 = vmatpush.msra.mxu0 0.0
    %957 = vmatpush.msra.mxu0 0.0
    %958 = vmatpush.msra.mxu0 0.0
    %959 = vmatpush.msra.mxu0 %v714
    %960 = vmatpush.msra.mxu0 %v711
    %961 = vmatmul.f32.gmra.mxu0 %v940
    %v962 = vpop.f32.mrf.mxu0
    %v963 = vadd.f32 0.0, %v962
    %964 = vmatmul.f32.gmra.mxu0 %v943
    %v965 = vpop.f32.mrf.mxu0
    %v966 = vadd.f32 0.0, %v965
    %967 = vdwg.mxu0
    %s968 = scalar_lea.vmem [#allocation31], 48
    %v969 = vld [vmem:[%s968] sm:$0xff]
    %v970 = vld [vmem:[%s968 + $0x8] sm:$0xff]
    %v971 = vmul.f32 %v963, %v969
    %v972 = vmul.f32 %v966, %v970
    %s973 = scalar_lea.vmem %s3, 96
    %v974 = vld [vmem:[%s973] sm:$0xff]
    %v975 = vld [vmem:[%s973 + $0x8] sm:$0xff]
    %v976 = vld [vmem:[%s973 + $0x10] sm:$0xff]
    %v977 = vld [vmem:[%s973 + $0x18] sm:$0xff]
    %v979 = vsel %vm412, %v971, 0
    %v982 = vsel %vm412, %v972, 0
    %984 = vmatpush.msra.mxu0 0.0
    %985 = vmatpush.msra.mxu0 0.0
    %986 = vmatpush.msra.mxu0 0.0
    %987 = vmatpush.msra.mxu0 0.0
    %988 = vmatpush.msra.mxu0 0.0
    %989 = vmatpush.msra.mxu0 0.0
    %990 = vmatpush.msra.mxu0 0.0
    %991 = vmatpush.msra.mxu0 0.0
    %992 = vmatpush.msra.mxu0 0.0
    %993 = vmatpush.msra.mxu0 0.0
    %994 = vmatpush.msra.mxu0 0.0
    %995 = vmatpush.msra.mxu0 0.0
    %996 = vmatpush.msra.mxu0 %v977
    %997 = vmatpush.msra.mxu0 %v976
    %998 = vmatpush.msra.mxu0 %v975
    %999 = vmatpush.msra.mxu0 %v974
    %1000 = vmatmul.f32.gmra.mxu0 %v979
    %v1001 = vpop.f32.mrf.mxu0
    %v1002 = vadd.f32 0.0, %v1001
    %1003 = vmatmul.f32.gmra.mxu0 %v982
    %v1004 = vpop.f32.mrf.mxu0
    %v1005 = vadd.f32 0.0, %v1004
    %1006 = vdwg.mxu0
    %v1007 = vadd.f32 %v934, %v1002
    %v1008 = vadd.f32 %v935, %v1005
    %v1009 = vadd.f32 %v1007, %v353
    %v1010 = vadd.f32 %v1008, %v354
    %v1011 = vld [vmem:[#allocation8] sm:$0x1]
    %v1012 = vld [vmem:[#allocation10] sm:$0x1]
    %v1013 = vsel %vm412, %v1009, 0.0
    %1014 = vadd.xlane.f32.xlu0 %v1013
    %v1015 = vpop.xlane.xlu0 %1014
    %v1016 = vsel %vm412, %v1010, 0.0
    %1017 = vadd.xlane.f32.xlu0 %v1016
    %v1018 = vpop.xlane.xlu0 %1017
    %v1019 = vrcp.pop 32.0
    %v1020 = vmul.f32 32.0, %v1019
    %v1021 = vsub.f32 1.0, %v1020
    %v1022 = vmul.f32 %v1019, %v1021
    %v1023 = vadd.f32 %v1019, %v1022
    %vm1024 = vweird.f32 %v1019
    %v1025 = vsel %vm1024, %v1019, %v1023
    %v1026 = vmul.f32 %v1015, %v1025
    %v1027 = vmul.f32 %v1018, %v1025
    %v1028 = vsub.f32 %v1009, %v1026
    %v1029 = vsub.f32 %v1010, %v1027
    %v1030 = vmul.f32 %v1028, %v1028
    %v1031 = vmul.f32 %v1029, %v1029
    %v1032 = vsel %vm412, %v1030, 0.0
    %1033 = vadd.xlane.f32.xlu0 %v1032
    %v1034 = vpop.xlane.xlu0 %1033
    %v1035 = vsel %vm412, %v1031, 0.0
    %1036 = vadd.xlane.f32.xlu0 %v1035
    %v1037 = vpop.xlane.xlu0 %1036
    %v1038 = vmul.f32 %v1034, %v1025
    %v1039 = vmul.f32 %v1037, %v1025
    %v1040 = vadd.f32 %v1038, 1e-05
    %v1041 = vadd.f32 %v1039, 1e-05
    %v1042 = vrsqrt.pop %v1040
    %v1043 = vmul.f32 %v1042, %v1040
    %v1044 = vmul.f32 %v1043, %v1042
    %v1045 = vmul.f32 0.5, %v1044
    %v1046 = vsub.f32 1.5, %v1045
    %v1047 = vmul.f32 %v1042, %v1046
    %vm1048 = vweird.f32 %v1040
    %vm1049 = vweird.f32 %v1042
    %vm1050 = vmor %vm1048, %vm1049
    %v1051 = vsel %vm1050, %v1042, %v1047
    %v1052 = vrsqrt.pop %v1041
    %v1053 = vmul.f32 %v1052, %v1041
    %v1054 = vmul.f32 %v1053, %v1052
    %v1055 = vmul.f32 0.5, %v1054
    %v1056 = vsub.f32 1.5, %v1055
    %v1057 = vmul.f32 %v1052, %v1056
    %vm1058 = vweird.f32 %v1041
    %vm1059 = vweird.f32 %v1052
    %vm1060 = vmor %vm1058, %vm1059
    %v1061 = vsel %vm1060, %v1052, %v1057
    %v1062 = vmul.f32 %v1028, %v1051
    %v1063 = vmul.f32 %v1029, %v1061
    %v1065 = vperm.slane %v1011, 0
    %v1067 = vmul.f32 %v1062, %v1065
    %v1068 = vmul.f32 %v1063, %v1065
    %v1070 = vperm.slane %v1012, 0
    %v1072 = vadd.f32 %v1067, %v1070
    %v1073 = vadd.f32 %v1068, %v1070
    %v1074 = vld [vmem:[#allocation11] sm:$0xff]
    %v1075 = vld [vmem:[#allocation11 + $0x8] sm:$0xff]
    %v1076 = vld [vmem:[#allocation11 + $0x10] sm:$0xff]
    %v1077 = vld [vmem:[#allocation11 + $0x18] sm:$0xff]
    %v1078 = vld [vmem:[#allocation11 + $0x20] sm:$0xff]
    %v1079 = vld [vmem:[#allocation11 + $0x28] sm:$0xff]
    %v1080 = vld [vmem:[#allocation11 + $0x30] sm:$0xff]
    %v1081 = vld [vmem:[#allocation11 + $0x38] sm:$0xff]
    %v1082 = vld [vmem:[#allocation11 + $0x40] sm:$0xff]
    %v1083 = vld [vmem:[#allocation11 + $0x48] sm:$0xff]
    %v1084 = vld [vmem:[#allocation11 + $0x50] sm:$0xff]
    %v1085 = vld [vmem:[#allocation11 + $0x58] sm:$0xff]
    %v1086 = vld [vmem:[#allocation13] sm:$0x7]
    %v1088 = vperm.slane %v1086, 0
    %v1089 = vperm.slane %v1086, 1
    %v1090 = vperm.slane %v1086, 2
    %v1095 = vsel %vm412, %v1072, 0
    %v1098 = vsel %vm412, %v1073, 0
    %1100 = vmatpush.msra.mxu0 0.0
    %1101 = vmatpush.msra.mxu0 0.0
    %1102 = vmatpush.msra.mxu0 0.0
    %1103 = vmatpush.msra.mxu0 0.0
    %1104 = vmatpush.msra.mxu0 0.0
    %1105 = vmatpush.msra.mxu0 0.0
    %1106 = vmatpush.msra.mxu0 0.0
    %1107 = vmatpush.msra.mxu0 0.0
    %1108 = vmatpush.msra.mxu0 0.0
    %1109 = vmatpush.msra.mxu0 0.0
    %1110 = vmatpush.msra.mxu0 0.0
    %1111 = vmatpush.msra.mxu0 0.0
    %1112 = vmatpush.msra.mxu0 %v1083
    %1113 = vmatpush.msra.mxu0 %v1080
    %1114 = vmatpush.msra.mxu0 %v1077
    %1115 = vmatpush.msra.mxu0 %v1074
    %1116 = vmatmul.f32.gmra.mxu0 %v1095
    %v1117 = vpop.f32.mrf.mxu0
    %v1118 = vadd.f32 %v1088, %v1117
    %1119 = vmatmul.f32.gmra.mxu0 %v1098
    %v1120 = vpop.f32.mrf.mxu0
    %v1121 = vadd.f32 %v1088, %v1120
    %1122 = vdwg.mxu0
    %1123 = vmatpush.msra.mxu0 0.0
    %1124 = vmatpush.msra.mxu0 0.0
    %1125 = vmatpush.msra.mxu0 0.0
    %1126 = vmatpush.msra.mxu0 0.0
    %1127 = vmatpush.msra.mxu0 0.0
    %1128 = vmatpush.msra.mxu0 0.0
    %1129 = vmatpush.msra.mxu0 0.0
    %1130 = vmatpush.msra.mxu0 0.0
    %1131 = vmatpush.msra.mxu0 0.0
    %1132 = vmatpush.msra.mxu0 0.0
    %1133 = vmatpush.msra.mxu0 0.0
    %1134 = vmatpush.msra.mxu0 0.0
    %1135 = vmatpush.msra.mxu0 %v1084
    %1136 = vmatpush.msra.mxu0 %v1081
    %1137 = vmatpush.msra.mxu0 %v1078
    %1138 = vmatpush.msra.mxu0 %v1075
    %1139 = vmatmul.f32.gmra.mxu0 %v1095
    %v1140 = vpop.f32.mrf.mxu0
    %v1141 = vadd.f32 %v1089, %v1140
    %1142 = vmatmul.f32.gmra.mxu0 %v1098
    %v1143 = vpop.f32.mrf.mxu0
    %v1144 = vadd.f32 %v1089, %v1143
    %1145 = vdwg.mxu0
    %1146 = vmatpush.msra.mxu0 0.0
    %1147 = vmatpush.msra.mxu0 0.0
    %1148 = vmatpush.msra.mxu0 0.0
    %1149 = vmatpush.msra.mxu0 0.0
    %1150 = vmatpush.msra.mxu0 0.0
    %1151 = vmatpush.msra.mxu0 0.0
    %1152 = vmatpush.msra.mxu0 0.0
    %1153 = vmatpush.msra.mxu0 0.0
    %1154 = vmatpush.msra.mxu0 0.0
    %1155 = vmatpush.msra.mxu0 0.0
    %1156 = vmatpush.msra.mxu0 0.0
    %1157 = vmatpush.msra.mxu0 0.0
    %1158 = vmatpush.msra.mxu0 %v1085
    %1159 = vmatpush.msra.mxu0 %v1082
    %1160 = vmatpush.msra.mxu0 %v1079
    %1161 = vmatpush.msra.mxu0 %v1076
    %1162 = vmatmul.f32.gmra.mxu0 %v1095
    %v1163 = vpop.f32.mrf.mxu0
    %v1164 = vadd.f32 %v1090, %v1163
    %1165 = vmatmul.f32.gmra.mxu0 %v1098
    %v1166 = vpop.f32.mrf.mxu0
    %v1167 = vadd.f32 %v1090, %v1166
    %1168 = vdwg.mxu0
    %v1169 = vmul.f32 %v1118, %v1141
    %v1170 = vmul.f32 %v1121, %v1144
    %1171 = vmatpush.msra.mxu0 %v370
    %1172 = vmatpush.msra.mxu0 %v369
    %1173 = vmatpush.msra.mxu0 %v368
    %1174 = vmatpush.msra.mxu0 %v367
    %1175 = vmatpush.msra.mxu0 %v366
    %1176 = vmatpush.msra.mxu0 %v365
    %1177 = vmatpush.msra.mxu0 %v364
    %1178 = vmatpush.msra.mxu0 %v363
    %1179 = vmatpush.msra.mxu0 %v362
    %1180 = vmatpush.msra.mxu0 %v361
    %1181 = vmatpush.msra.mxu0 %v360
    %1182 = vmatpush.msra.mxu0 %v359
    %1183 = vmatpush.msra.mxu0 %v358
    %1184 = vmatpush.msra.mxu0 %v357
    %1185 = vmatpush.msra.mxu0 %v356
    %1186 = vmatpush.msra.mxu0 %v355
    %1187 = vmatmul.f32.gmra.mxu0 %v1169
    %v1188 = vpop.f32.mrf.mxu0
    %v1189 = vadd.f32 0.0, %v1188
    %1190 = vmatmul.f32.gmra.mxu0 %v1170
    %v1191 = vpop.f32.mrf.mxu0
    %v1192 = vadd.f32 0.0, %v1191
    %1193 = vdwg.mxu0
    %v1194 = vsel %vm513, %v1189, -inf
    %1195 = vmax.xlane.f32.xlu0 %v1194
    %v1196 = vpop.xlane.xlu0 %1195
    %v1197 = vsel %vm513, %v1192, -inf
    %1198 = vmax.xlane.f32.xlu0 %v1197
    %v1199 = vpop.xlane.xlu0 %1198
    %v1200 = vmul.f32 %v1196, %v520
    %v1201 = vmul.f32 %v1199, %v520
    %v1202 = vadd.f32 %v1200, 0.0
    %v1203 = vadd.f32 %v1201, 0.0
    %v1204 = vsel %vm525, %v1189, -inf
    %1205 = vmax.xlane.f32.xlu0 %v1204
    %v1206 = vpop.xlane.xlu0 %1205
    %v1207 = vsel %vm525, %v1192, -inf
    %1208 = vmax.xlane.f32.xlu0 %v1207
    %v1209 = vpop.xlane.xlu0 %1208
    %v1210 = vmul.f32 %v1206, %v532
    %v1211 = vmul.f32 %v1209, %v532
    %v1212 = vadd.f32 %v1202, %v1210
    %v1213 = vadd.f32 %v1203, %v1211
    %v1214 = vsel %vm537, %v1189, -inf
    %1215 = vmax.xlane.f32.xlu0 %v1214
    %v1216 = vpop.xlane.xlu0 %1215
    %v1217 = vsel %vm537, %v1192, -inf
    %1218 = vmax.xlane.f32.xlu0 %v1217
    %v1219 = vpop.xlane.xlu0 %1218
    %v1220 = vmul.f32 %v1216, %v544
    %v1221 = vmul.f32 %v1219, %v544
    %v1222 = vadd.f32 %v1212, %v1220
    %v1223 = vadd.f32 %v1213, %v1221
    %v1224 = vsel %vm549, %v1189, -inf
    %1225 = vmax.xlane.f32.xlu0 %v1224
    %v1226 = vpop.xlane.xlu0 %1225
    %v1227 = vsel %vm549, %v1192, -inf
    %1228 = vmax.xlane.f32.xlu0 %v1227
    %v1229 = vpop.xlane.xlu0 %1228
    %v1230 = vmul.f32 %v1226, %v556
    %v1231 = vmul.f32 %v1229, %v556
    %v1232 = vadd.f32 %v1222, %v1230
    %v1233 = vadd.f32 %v1223, %v1231
    %v1234 = vsub.f32 %v1189, %v1232
    %v1235 = vsub.f32 %v1192, %v1233
    %v1236 = vmul.f32 %v1234, 1.442695
    %v1237 = vpow.pop %v1236
    %v1238 = vmul.f32 %v1235, 1.442695
    %v1239 = vpow.pop %v1238
    %v1241 = vsel %vm567, %v1237, 0
    %v1244 = vsel %vm567, %v1239, 0
    %1246 = vmatpush.msra.mxu0 0.0
    %1247 = vmatpush.msra.mxu0 0.0
    %1248 = vmatpush.msra.mxu0 0.0
    %1249 = vmatpush.msra.mxu0 0.0
    %1250 = vmatpush.msra.mxu0 0.0
    %1251 = vmatpush.msra.mxu0 0.0
    %1252 = vmatpush.msra.mxu0 0.0
    %1253 = vmatpush.msra.mxu0 0.0
    %1254 = vmatpush.msra.mxu0 0.0
    %1255 = vmatpush.msra.mxu0 0.0
    %1256 = vmatpush.msra.mxu0 0.0
    %1257 = vmatpush.msra.mxu0 0.0
    %1258 = vmatpush.msra.mxu0 0.0
    %1259 = vmatpush.msra.mxu0 0.0
    %1260 = vmatpush.msra.mxu0 %v372
    %1261 = vmatpush.msra.mxu0 %v371
    %1262 = vmatmul.f32.gmra.mxu0 %v1241
    %v1263 = vpop.f32.mrf.mxu0
    %v1264 = vadd.f32 0.0, %v1263
    %1265 = vmatmul.f32.gmra.mxu0 %v1244
    %v1266 = vpop.f32.mrf.mxu0
    %v1267 = vadd.f32 0.0, %v1266
    %1268 = vdwg.mxu0
    %v1269 = vrcp.pop %v1264
    %v1270 = vmul.f32 %v1264, %v1269
    %v1271 = vsub.f32 1.0, %v1270
    %v1272 = vmul.f32 %v1269, %v1271
    %v1273 = vadd.f32 %v1269, %v1272
    %vm1274 = vweird.f32 %v1264
    %vm1275 = vweird.f32 %v1269
    %vm1276 = vmor %vm1274, %vm1275
    %v1277 = vsel %vm1276, %v1269, %v1273
    %v1278 = vand.u32 2147483647, %v1264
    %vm1279 = vcmp.eq.f32.partialorder %v1278, 8.507059e+37
    %v1280 = vand.u32 %v1264, 2147483648
    %v1281 = vor.u32 1.1754944e-38, %v1280
    %v1282 = vsel %vm1279, %v1281, %v1277
    %v1283 = vmul.f32 1.0, %v1282
    %v1284 = vrcp.pop %v1267
    %v1285 = vmul.f32 %v1267, %v1284
    %v1286 = vsub.f32 1.0, %v1285
    %v1287 = vmul.f32 %v1284, %v1286
    %v1288 = vadd.f32 %v1284, %v1287
    %vm1289 = vweird.f32 %v1267
    %vm1290 = vweird.f32 %v1284
    %vm1291 = vmor %vm1289, %vm1290
    %v1292 = vsel %vm1291, %v1284, %v1288
    %v1293 = vand.u32 2147483647, %v1267
    %vm1294 = vcmp.eq.f32.partialorder %v1293, 8.507059e+37
    %v1295 = vand.u32 %v1267, 2147483648
    %v1296 = vor.u32 1.1754944e-38, %v1295
    %v1297 = vsel %vm1294, %v1296, %v1292
    %v1298 = vmul.f32 1.0, %v1297
    %v1300 = vsel %vm513, %v1283, 0
    %v1303 = vsel %vm513, %v1298, 0
    %1305 = vmatpush.msra.mxu0 0.0
    %1306 = vmatpush.msra.mxu0 0.0
    %1307 = vmatpush.msra.mxu0 0.0
    %1308 = vmatpush.msra.mxu0 0.0
    %1309 = vmatpush.msra.mxu0 0.0
    %1310 = vmatpush.msra.mxu0 0.0
    %1311 = vmatpush.msra.mxu0 0.0
    %1312 = vmatpush.msra.mxu0 0.0
    %1313 = vmatpush.msra.mxu0 0.0
    %1314 = vmatpush.msra.mxu0 0.0
    %1315 = vmatpush.msra.mxu0 0.0
    %1316 = vmatpush.msra.mxu0 0.0
    %1317 = vmatpush.msra.mxu0 0.0
    %1318 = vmatpush.msra.mxu0 0.0
    %1319 = vmatpush.msra.mxu0 0.0
    %1320 = vmatpush.msra.mxu0 %v635
    %1321 = vmatmul.f32.gmra.mxu0 %v1300
    %v1322 = vpop.f32.mrf.mxu0
    %v1323 = vadd.f32 0.0, %v1322
    %1324 = vmatmul.f32.gmra.mxu0 %v1303
    %v1325 = vpop.f32.mrf.mxu0
    %v1326 = vadd.f32 0.0, %v1325
    %1327 = vdwg.mxu0
    %v1328 = vmul.f32 %v1237, %v1323
    %v1329 = vmul.f32 %v1239, %v1326
    %v1331 = vsel %vm567, %v1328, 0
    %v1334 = vsel %vm567, %v1329, 0
    %1336 = vmatpush.msra.mxu0 0.0
    %1337 = vmatpush.msra.mxu0 0.0
    %1338 = vmatpush.msra.mxu0 0.0
    %1339 = vmatpush.msra.mxu0 0.0
    %1340 = vmatpush.msra.mxu0 0.0
    %1341 = vmatpush.msra.mxu0 0.0
    %1342 = vmatpush.msra.mxu0 0.0
    %1343 = vmatpush.msra.mxu0 0.0
    %1344 = vmatpush.msra.mxu0 0.0
    %1345 = vmatpush.msra.mxu0 0.0
    %1346 = vmatpush.msra.mxu0 0.0
    %1347 = vmatpush.msra.mxu0 0.0
    %1348 = vmatpush.msra.mxu0 0.0
    %1349 = vmatpush.msra.mxu0 0.0
    %1350 = vmatpush.msra.mxu0 %v375
    %1351 = vmatpush.msra.mxu0 %v374
    %1352 = vmatmul.f32.gmra.mxu0 %v1331
    %v1353 = vpop.f32.mrf.mxu0
    %v1354 = vadd.f32 0.0, %v1353
    %1355 = vmatmul.f32.gmra.mxu0 %v1334
    %v1356 = vpop.f32.mrf.mxu0
    %v1357 = vadd.f32 0.0, %v1356
    %1358 = vdwg.mxu0
    %v1359 = vmul.f32 %v1354, %v1164
    %v1360 = vmul.f32 %v1357, %v1167
    %1361 = vmatpush.msra.mxu0 %v391
    %1362 = vmatpush.msra.mxu0 %v390
    %1363 = vmatpush.msra.mxu0 %v389
    %1364 = vmatpush.msra.mxu0 %v388
    %1365 = vmatpush.msra.mxu0 %v387
    %1366 = vmatpush.msra.mxu0 %v386
    %1367 = vmatpush.msra.mxu0 %v385
    %1368 = vmatpush.msra.mxu0 %v384
    %1369 = vmatpush.msra.mxu0 %v383
    %1370 = vmatpush.msra.mxu0 %v382
    %1371 = vmatpush.msra.mxu0 %v381
    %1372 = vmatpush.msra.mxu0 %v380
    %1373 = vmatpush.msra.mxu0 %v379
    %1374 = vmatpush.msra.mxu0 %v378
    %1375 = vmatpush.msra.mxu0 %v377
    %1376 = vmatpush.msra.mxu0 %v376
    %1377 = vmatmul.f32.gmra.mxu0 %v1359
    %v1378 = vpop.f32.mrf.mxu0
    %v1379 = vadd.f32 0.0, %v1378
    %1380 = vmatmul.f32.gmra.mxu0 %v1360
    %v1381 = vpop.f32.mrf.mxu0
    %v1382 = vadd.f32 0.0, %v1381
    %1383 = vdwg.mxu0
    %v1384 = vld [vmem:[#allocation14] sm:$0x1]
    %1385 = vmatpush.msra.mxu0 0.0
    %1386 = vmatpush.msra.mxu0 0.0
    %1387 = vmatpush.msra.mxu0 0.0
    %1388 = vmatpush.msra.mxu0 0.0
    %1389 = vmatpush.msra.mxu0 0.0
    %1390 = vmatpush.msra.mxu0 0.0
    %1391 = vmatpush.msra.mxu0 0.0
    %1392 = vmatpush.msra.mxu0 0.0
    %1393 = vmatpush.msra.mxu0 0.0
    %1394 = vmatpush.msra.mxu0 0.0
    %1395 = vmatpush.msra.mxu0 0.0
    %1396 = vmatpush.msra.mxu0 0.0
    %1397 = vmatpush.msra.mxu0 0.0
    %1398 = vmatpush.msra.mxu0 0.0
    %1399 = vmatpush.msra.mxu0 %v1382
    %1400 = vmatpush.msra.mxu0 %v1379
    %1401 = vmatmul.f32.gmra.mxu0 %v720
    %v1402 = vpop.f32.mrf.mxu0
    %v1403 = vadd.f32 0.0, %v1402
    %1404 = vmatmul.f32.gmra.mxu0 %v723
    %v1405 = vpop.f32.mrf.mxu0
    %v1406 = vadd.f32 0.0, %v1405
    %1407 = vdwg.mxu0
    %v1408 = vmul.f32 %v1403, %v748
    %v1409 = vmul.f32 %v1406, %v749
    %v1410 = vld [vmem:[%s9] sm:$0xff]
    %v1411 = vld [vmem:[%s9 + $0x8] sm:$0xff]
    %v1412 = vld [vmem:[%s9 + $0x10] sm:$0xff]
    %v1413 = vld [vmem:[%s9 + $0x18] sm:$0xff]
    %v1415 = vsel %vm412, %v1408, 0
    %v1418 = vsel %vm412, %v1409, 0
    %1420 = vmatpush.msra.mxu0 0.0
    %1421 = vmatpush.msra.mxu0 0.0
    %1422 = vmatpush.msra.mxu0 0.0
    %1423 = vmatpush.msra.mxu0 0.0
    %1424 = vmatpush.msra.mxu0 0.0
    %1425 = vmatpush.msra.mxu0 0.0
    %1426 = vmatpush.msra.mxu0 0.0
    %1427 = vmatpush.msra.mxu0 0.0
    %1428 = vmatpush.msra.mxu0 0.0
    %1429 = vmatpush.msra.mxu0 0.0
    %1430 = vmatpush.msra.mxu0 0.0
    %1431 = vmatpush.msra.mxu0 0.0
    %1432 = vmatpush.msra.mxu0 %v1413
    %1433 = vmatpush.msra.mxu0 %v1412
    %1434 = vmatpush.msra.mxu0 %v1411
    %1435 = vmatpush.msra.mxu0 %v1410
    %1436 = vmatmul.f32.gmra.mxu0 %v1415
    %v1437 = vpop.f32.mrf.mxu0
    %v1438 = vadd.f32 0.0, %v1437
    %1439 = vmatmul.f32.gmra.mxu0 %v1418
    %v1440 = vpop.f32.mrf.mxu0
    %v1441 = vadd.f32 0.0, %v1440
    %1442 = vdwg.mxu0
    %v1444 = vperm.slane %v1384, 0
    %v1446 = vadd.f32 %v1444, %v1438
    %v1447 = vadd.f32 %v1444, %v1441
    %1448 = vmatpush.msra.mxu0 0.0
    %1449 = vmatpush.msra.mxu0 0.0
    %1450 = vmatpush.msra.mxu0 0.0
    %1451 = vmatpush.msra.mxu0 0.0
    %1452 = vmatpush.msra.mxu0 0.0
    %1453 = vmatpush.msra.mxu0 0.0
    %1454 = vmatpush.msra.mxu0 0.0
    %1455 = vmatpush.msra.mxu0 0.0
    %1456 = vmatpush.msra.mxu0 0.0
    %1457 = vmatpush.msra.mxu0 0.0
    %1458 = vmatpush.msra.mxu0 0.0
    %1459 = vmatpush.msra.mxu0 0.0
    %1460 = vmatpush.msra.mxu0 0.0
    %1461 = vmatpush.msra.mxu0 0.0
    %1462 = vmatpush.msra.mxu0 %v1382
    %1463 = vmatpush.msra.mxu0 %v1379
    %1464 = vmatmul.f32.gmra.mxu0 %v794
    %v1465 = vpop.f32.mrf.mxu0
    %v1466 = vadd.f32 0.0, %v1465
    %1467 = vmatmul.f32.gmra.mxu0 %v797
    %v1468 = vpop.f32.mrf.mxu0
    %v1469 = vadd.f32 0.0, %v1468
    %1470 = vdwg.mxu0
    %v1471 = vmul.f32 %v1466, %v823
    %v1472 = vmul.f32 %v1469, %v824
    %s1473 = scalar_lea.vmem %s9, 32
    %v1474 = vld [vmem:[%s1473] sm:$0xff]
    %v1475 = vld [vmem:[%s1473 + $0x8] sm:$0xff]
    %v1476 = vld [vmem:[%s1473 + $0x10] sm:$0xff]
    %v1477 = vld [vmem:[%s1473 + $0x18] sm:$0xff]
    %v1479 = vsel %vm412, %v1471, 0
    %v1482 = vsel %vm412, %v1472, 0
    %1484 = vmatpush.msra.mxu0 0.0
    %1485 = vmatpush.msra.mxu0 0.0
    %1486 = vmatpush.msra.mxu0 0.0
    %1487 = vmatpush.msra.mxu0 0.0
    %1488 = vmatpush.msra.mxu0 0.0
    %1489 = vmatpush.msra.mxu0 0.0
    %1490 = vmatpush.msra.mxu0 0.0
    %1491 = vmatpush.msra.mxu0 0.0
    %1492 = vmatpush.msra.mxu0 0.0
    %1493 = vmatpush.msra.mxu0 0.0
    %1494 = vmatpush.msra.mxu0 0.0
    %1495 = vmatpush.msra.mxu0 0.0
    %1496 = vmatpush.msra.mxu0 %v1477
    %1497 = vmatpush.msra.mxu0 %v1476
    %1498 = vmatpush.msra.mxu0 %v1475
    %1499 = vmatpush.msra.mxu0 %v1474
    %1500 = vmatmul.f32.gmra.mxu0 %v1479
    %v1501 = vpop.f32.mrf.mxu0
    %v1502 = vadd.f32 0.0, %v1501
    %1503 = vmatmul.f32.gmra.mxu0 %v1482
    %v1504 = vpop.f32.mrf.mxu0
    %v1505 = vadd.f32 0.0, %v1504
    %1506 = vdwg.mxu0
    %v1507 = vadd.f32 %v1446, %v1502
    %v1508 = vadd.f32 %v1447, %v1505
    %1509 = vmatpush.msra.mxu0 0.0
    %1510 = vmatpush.msra.mxu0 0.0
    %1511 = vmatpush.msra.mxu0 0.0
    %1512 = vmatpush.msra.mxu0 0.0
    %1513 = vmatpush.msra.mxu0 0.0
    %1514 = vmatpush.msra.mxu0 0.0
    %1515 = vmatpush.msra.mxu0 0.0
    %1516 = vmatpush.msra.mxu0 0.0
    %1517 = vmatpush.msra.mxu0 0.0
    %1518 = vmatpush.msra.mxu0 0.0
    %1519 = vmatpush.msra.mxu0 0.0
    %1520 = vmatpush.msra.mxu0 0.0
    %1521 = vmatpush.msra.mxu0 0.0
    %1522 = vmatpush.msra.mxu0 0.0
    %1523 = vmatpush.msra.mxu0 %v1382
    %1524 = vmatpush.msra.mxu0 %v1379
    %1525 = vmatmul.f32.gmra.mxu0 %v867
    %v1526 = vpop.f32.mrf.mxu0
    %v1527 = vadd.f32 0.0, %v1526
    %1528 = vmatmul.f32.gmra.mxu0 %v870
    %v1529 = vpop.f32.mrf.mxu0
    %v1530 = vadd.f32 0.0, %v1529
    %1531 = vdwg.mxu0
    %v1532 = vmul.f32 %v1527, %v896
    %v1533 = vmul.f32 %v1530, %v897
    %s1534 = scalar_lea.vmem %s9, 64
    %v1535 = vld [vmem:[%s1534] sm:$0xff]
    %v1536 = vld [vmem:[%s1534 + $0x8] sm:$0xff]
    %v1537 = vld [vmem:[%s1534 + $0x10] sm:$0xff]
    %v1538 = vld [vmem:[%s1534 + $0x18] sm:$0xff]
    %v1540 = vsel %vm412, %v1532, 0
    %v1543 = vsel %vm412, %v1533, 0
    %1545 = vmatpush.msra.mxu0 0.0
    %1546 = vmatpush.msra.mxu0 0.0
    %1547 = vmatpush.msra.mxu0 0.0
    %1548 = vmatpush.msra.mxu0 0.0
    %1549 = vmatpush.msra.mxu0 0.0
    %1550 = vmatpush.msra.mxu0 0.0
    %1551 = vmatpush.msra.mxu0 0.0
    %1552 = vmatpush.msra.mxu0 0.0
    %1553 = vmatpush.msra.mxu0 0.0
    %1554 = vmatpush.msra.mxu0 0.0
    %1555 = vmatpush.msra.mxu0 0.0
    %1556 = vmatpush.msra.mxu0 0.0
    %1557 = vmatpush.msra.mxu0 %v1538
    %1558 = vmatpush.msra.mxu0 %v1537
    %1559 = vmatpush.msra.mxu0 %v1536
    %1560 = vmatpush.msra.mxu0 %v1535
    %1561 = vmatmul.f32.gmra.mxu0 %v1540
    %v1562 = vpop.f32.mrf.mxu0
    %v1563 = vadd.f32 0.0, %v1562
    %1564 = vmatmul.f32.gmra.mxu0 %v1543
    %v1565 = vpop.f32.mrf.mxu0
    %v1566 = vadd.f32 0.0, %v1565
    %1567 = vdwg.mxu0
    %v1568 = vadd.f32 %v1507, %v1563
    %v1569 = vadd.f32 %v1508, %v1566
    %1570 = vmatpush.msra.mxu0 0.0
    %1571 = vmatpush.msra.mxu0 0.0
    %1572 = vmatpush.msra.mxu0 0.0
    %1573 = vmatpush.msra.mxu0 0.0
    %1574 = vmatpush.msra.mxu0 0.0
    %1575 = vmatpush.msra.mxu0 0.0
    %1576 = vmatpush.msra.mxu0 0.0
    %1577 = vmatpush.msra.mxu0 0.0
    %1578 = vmatpush.msra.mxu0 0.0
    %1579 = vmatpush.msra.mxu0 0.0
    %1580 = vmatpush.msra.mxu0 0.0
    %1581 = vmatpush.msra.mxu0 0.0
    %1582 = vmatpush.msra.mxu0 0.0
    %1583 = vmatpush.msra.mxu0 0.0
    %1584 = vmatpush.msra.mxu0 %v1382
    %1585 = vmatpush.msra.mxu0 %v1379
    %1586 = vmatmul.f32.gmra.mxu0 %v940
    %v1587 = vpop.f32.mrf.mxu0
    %v1588 = vadd.f32 0.0, %v1587
    %1589 = vmatmul.f32.gmra.mxu0 %v943
    %v1590 = vpop.f32.mrf.mxu0
    %v1591 = vadd.f32 0.0, %v1590
    %1592 = vdwg.mxu0
    %v1593 = vmul.f32 %v1588, %v969
    %v1594 = vmul.f32 %v1591, %v970
    %s1595 = scalar_lea.vmem %s9, 96
    %v1596 = vld [vmem:[%s1595] sm:$0xff]
    %v1597 = vld [vmem:[%s1595 + $0x8] sm:$0xff]
    %v1598 = vld [vmem:[%s1595 + $0x10] sm:$0xff]
    %v1599 = vld [vmem:[%s1595 + $0x18] sm:$0xff]
    %v1601 = vsel %vm412, %v1593, 0
    %v1604 = vsel %vm412, %v1594, 0
    %1606 = vmatpush.msra.mxu0 0.0
    %1607 = vmatpush.msra.mxu0 0.0
    %1608 = vmatpush.msra.mxu0 0.0
    %1609 = vmatpush.msra.mxu0 0.0
    %1610 = vmatpush.msra.mxu0 0.0
    %1611 = vmatpush.msra.mxu0 0.0
    %1612 = vmatpush.msra.mxu0 0.0
    %1613 = vmatpush.msra.mxu0 0.0
    %1614 = vmatpush.msra.mxu0 0.0
    %1615 = vmatpush.msra.mxu0 0.0
    %1616 = vmatpush.msra.mxu0 0.0
    %1617 = vmatpush.msra.mxu0 0.0
    %1618 = vmatpush.msra.mxu0 %v1599
    %1619 = vmatpush.msra.mxu0 %v1598
    %1620 = vmatpush.msra.mxu0 %v1597
    %1621 = vmatpush.msra.mxu0 %v1596
    %1622 = vmatmul.f32.gmra.mxu0 %v1601
    %v1623 = vpop.f32.mrf.mxu0
    %v1624 = vadd.f32 0.0, %v1623
    %1625 = vmatmul.f32.gmra.mxu0 %v1604
    %v1626 = vpop.f32.mrf.mxu0
    %v1627 = vadd.f32 0.0, %v1626
    %1628 = vdwg.mxu0
    %v1629 = vadd.f32 %v1568, %v1624
    %v1630 = vadd.f32 %v1569, %v1627
    %v1631 = vadd.f32 %v1629, %v1072
    %v1632 = vadd.f32 %v1630, %v1073
    %v1633 = vld [vmem:[#allocation16] sm:$0x1]
    %v1634 = vld [vmem:[#allocation17] sm:$0x1]
    %v1635 = vsel %vm412, %v1631, 0.0
    %1636 = vadd.xlane.f32.xlu0 %v1635
    %v1637 = vpop.xlane.xlu0 %1636
    %v1638 = vsel %vm412, %v1632, 0.0
    %1639 = vadd.xlane.f32.xlu0 %v1638
    %v1640 = vpop.xlane.xlu0 %1639
    %v1641 = vmul.f32 %v1637, %v1025
    %v1642 = vmul.f32 %v1640, %v1025
    %v1643 = vsub.f32 %v1631, %v1641
    %v1644 = vsub.f32 %v1632, %v1642
    %v1645 = vmul.f32 %v1643, %v1643
    %v1646 = vmul.f32 %v1644, %v1644
    %v1647 = vsel %vm412, %v1645, 0.0
    %1648 = vadd.xlane.f32.xlu0 %v1647
    %v1649 = vpop.xlane.xlu0 %1648
    %v1650 = vsel %vm412, %v1646, 0.0
    %1651 = vadd.xlane.f32.xlu0 %v1650
    %v1652 = vpop.xlane.xlu0 %1651
    %v1653 = vmul.f32 %v1649, %v1025
    %v1654 = vmul.f32 %v1652, %v1025
    %v1655 = vadd.f32 %v1653, 1e-05
    %v1656 = vadd.f32 %v1654, 1e-05
    %v1657 = vrsqrt.pop %v1655
    %v1658 = vmul.f32 %v1657, %v1655
    %v1659 = vmul.f32 %v1658, %v1657
    %v1660 = vmul.f32 0.5, %v1659
    %v1661 = vsub.f32 1.5, %v1660
    %v1662 = vmul.f32 %v1657, %v1661
    %vm1663 = vweird.f32 %v1655
    %vm1664 = vweird.f32 %v1657
    %vm1665 = vmor %vm1663, %vm1664
    %v1666 = vsel %vm1665, %v1657, %v1662
    %v1667 = vrsqrt.pop %v1656
    %v1668 = vmul.f32 %v1667, %v1656
    %v1669 = vmul.f32 %v1668, %v1667
    %v1670 = vmul.f32 0.5, %v1669
    %v1671 = vsub.f32 1.5, %v1670
    %v1672 = vmul.f32 %v1667, %v1671
    %vm1673 = vweird.f32 %v1656
    %vm1674 = vweird.f32 %v1667
    %vm1675 = vmor %vm1673, %vm1674
    %v1676 = vsel %vm1675, %v1667, %v1672
    %v1677 = vmul.f32 %v1643, %v1666
    %v1678 = vmul.f32 %v1644, %v1676
    %v1680 = vperm.slane %v1633, 0
    %v1682 = vmul.f32 %v1677, %v1680
    %v1683 = vmul.f32 %v1678, %v1680
    %v1685 = vperm.slane %v1634, 0
    %v1687 = vadd.f32 %v1682, %v1685
    %v1688 = vadd.f32 %v1683, %v1685
    %v1689 = vld [vmem:[#allocation19] sm:$0xff]
    %v1690 = vld [vmem:[#allocation19 + $0x8] sm:$0xff]
    %v1691 = vld [vmem:[#allocation19 + $0x10] sm:$0xff]
    %v1692 = vld [vmem:[#allocation19 + $0x18] sm:$0xff]
    %v1693 = vld [vmem:[#allocation20] sm:$0x1]
    %v1695 = vperm.slane %v1693, 0
    %v1698 = vsel %vm412, %v1687, 0
    %v1701 = vsel %vm412, %v1688, 0
    %1703 = vmatpush.msra.mxu0 0.0
    %1704 = vmatpush.msra.mxu0 0.0
    %1705 = vmatpush.msra.mxu0 0.0
    %1706 = vmatpush.msra.mxu0 0.0
    %1707 = vmatpush.msra.mxu0 0.0
    %1708 = vmatpush.msra.mxu0 0.0
    %1709 = vmatpush.msra.mxu0 0.0
    %1710 = vmatpush.msra.mxu0 0.0
    %1711 = vmatpush.msra.mxu0 0.0
    %1712 = vmatpush.msra.mxu0 0.0
    %1713 = vmatpush.msra.mxu0 0.0
    %1714 = vmatpush.msra.mxu0 0.0
    %1715 = vmatpush.msra.mxu0 %v1692
    %1716 = vmatpush.msra.mxu0 %v1691
    %1717 = vmatpush.msra.mxu0 %v1690
    %1718 = vmatpush.msra.mxu0 %v1689
    %1719 = vmatmul.f32.gmra.mxu0 %v1698
    %v1720 = vpop.f32.mrf.mxu0
    %v1721 = vadd.f32 %v1695, %v1720
    %1722 = vmatmul.f32.gmra.mxu0 %v1701
    %v1723 = vpop.f32.mrf.mxu0
    %v1724 = vadd.f32 %v1695, %v1723
    %1725 = vdwg.mxu0
    %v1726 = vmax.f32 %v1721, 0.0
    %v1727 = vmax.f32 %v1724, 0.0
    %v1728 = vld [vmem:[%s15] sm:$0xff]
    %v1729 = vld [vmem:[%s15 + $0x8] sm:$0xff]
    %v1730 = vld [vmem:[%s15 + $0x10] sm:$0xff]
    %v1731 = vld [vmem:[%s15 + $0x18] sm:$0xff]
    %v1732 = vld [vmem:[%s15 + $0x20] sm:$0xff]
    %v1733 = vld [vmem:[%s15 + $0x28] sm:$0xff]
    %v1734 = vld [vmem:[%s15 + $0x30] sm:$0xff]
    %v1735 = vld [vmem:[%s15 + $0x38] sm:$0xff]
    %v1736 = vld [vmem:[#allocation22] sm:$0x1]
    %v1738 = vperm.slane %v1736, 0
    %vm1740 = vcmask 523264
    %v1742 = vsel %vm1740, %v1726, 0
    %v1745 = vsel %vm1740, %v1727, 0
    %1747 = vmatpush.msra.mxu0 0.0
    %1748 = vmatpush.msra.mxu0 0.0
    %1749 = vmatpush.msra.mxu0 0.0
    %1750 = vmatpush.msra.mxu0 0.0
    %1751 = vmatpush.msra.mxu0 0.0
    %1752 = vmatpush.msra.mxu0 0.0
    %1753 = vmatpush.msra.mxu0 0.0
    %1754 = vmatpush.msra.mxu0 0.0
    %1755 = vmatpush.msra.mxu0 %v1735
    %1756 = vmatpush.msra.mxu0 %v1734
    %1757 = vmatpush.msra.mxu0 %v1733
    %1758 = vmatpush.msra.mxu0 %v1732
    %1759 = vmatpush.msra.mxu0 %v1731
    %1760 = vmatpush.msra.mxu0 %v1730
    %1761 = vmatpush.msra.mxu0 %v1729
    %1762 = vmatpush.msra.mxu0 %v1728
    %1763 = vmatmul.f32.gmra.mxu0 %v1742
    %v1764 = vpop.f32.mrf.mxu0
    %v1765 = vadd.f32 %v1738, %v1764
    %1766 = vmatmul.f32.gmra.mxu0 %v1745
    %v1767 = vpop.f32.mrf.mxu0
    %v1768 = vadd.f32 %v1738, %v1767
    %1769 = vdwg.mxu0
    %v1770 = vadd.f32 %v1765, %v1687
    %v1771 = vadd.f32 %v1768, %v1688
    %v1772 = vld [vmem:[#allocation23] sm:$0x1]
    %v1773 = vld [vmem:[#allocation25] sm:$0x1]
    %v1774 = vsel %vm412, %v1770, 0.0
    %1775 = vadd.xlane.f32.xlu0 %v1774
    %v1776 = vpop.xlane.xlu0 %1775
    %v1777 = vsel %vm412, %v1771, 0.0
    %1778 = vadd.xlane.f32.xlu0 %v1777
    %v1779 = vpop.xlane.xlu0 %1778
    %v1780 = vmul.f32 %v1776, %v1025
    %v1781 = vmul.f32 %v1779, %v1025
    %v1782 = vsub.f32 %v1770, %v1780
    %v1783 = vsub.f32 %v1771, %v1781
    %v1784 = vmul.f32 %v1782, %v1782
    %v1785 = vmul.f32 %v1783, %v1783
    %v1786 = vsel %vm412, %v1784, 0.0
    %1787 = vadd.xlane.f32.xlu0 %v1786
    %v1788 = vpop.xlane.xlu0 %1787
    %v1789 = vsel %vm412, %v1785, 0.0
    %1790 = vadd.xlane.f32.xlu0 %v1789
    %v1791 = vpop.xlane.xlu0 %1790
    %v1792 = vmul.f32 %v1788, %v1025
    %v1793 = vmul.f32 %v1791, %v1025
    %v1794 = vadd.f32 %v1792, 1e-05
    %v1795 = vadd.f32 %v1793, 1e-05
    %v1796 = vrsqrt.pop %v1794
    %v1797 = vmul.f32 %v1796, %v1794
    %v1798 = vmul.f32 %v1797, %v1796
    %v1799 = vmul.f32 0.5, %v1798
    %v1800 = vsub.f32 1.5, %v1799
    %v1801 = vmul.f32 %v1796, %v1800
    %vm1802 = vweird.f32 %v1794
    %vm1803 = vweird.f32 %v1796
    %vm1804 = vmor %vm1802, %vm1803
    %v1805 = vsel %vm1804, %v1796, %v1801
    %v1806 = vrsqrt.pop %v1795
    %v1807 = vmul.f32 %v1806, %v1795
    %v1808 = vmul.f32 %v1807, %v1806
    %v1809 = vmul.f32 0.5, %v1808
    %v1810 = vsub.f32 1.5, %v1809
    %v1811 = vmul.f32 %v1806, %v1810
    %vm1812 = vweird.f32 %v1795
    %vm1813 = vweird.f32 %v1806
    %vm1814 = vmor %vm1812, %vm1813
    %v1815 = vsel %vm1814, %v1806, %v1811
    %v1816 = vmul.f32 %v1782, %v1805
    %v1817 = vmul.f32 %v1783, %v1815
    %v1819 = vperm.slane %v1772, 0
    %v1821 = vmul.f32 %v1816, %v1819
    %v1822 = vmul.f32 %v1817, %v1819
    %v1824 = vperm.slane %v1773, 0
    %v1826 = vadd.f32 %v1821, %v1824
    %v1827 = vadd.f32 %v1822, %v1824
    %1828 = vst.msk [vmem:[#allocation32] sm:$0xff] %vm412, %v1826
    %1829 = vst.msk [vmem:[#allocation32 + $0x8] sm:$0xff] %vm412, %v1827
    // Predicated region
    $region182: #{tpu_custom_call.1} parent=1 // pred_check
      _
    $region183: #{tpu_custom_call.1} parent=1 // pred_check_branch
      %1831 = sbr.rel (0) target = $region185
    $region184: #{tpu_custom_call.1} parent=1 // pred_region
      %1833 = vsyncadd [#allocation4], 0
      %s1834 = sshll.u32 [#allocation32], 4
      %s1835 = int_to_ptr.vmem [resolvable:$true] %s1834
      %s1836 = sshll.u32 %s26, 4
      %s1837 = int_to_ptr.hbm [resolvable:$true] %s1836
      %1842 = dma.vmem_to_hbm [thread:$0]  %s1835, 256, %s1837, [#allocation4], 128, 128, 8
    $region185: #{tpu_custom_call.1} parent=1 // pred_fallthru
      _
    // Predicated region
    $region186: #{tpu_custom_call.1} parent=1 // pred_check
      _
    $region187: #{tpu_custom_call.1} parent=1 // pred_check_branch
      %1844 = sbr.rel (0) target = $region189
    $region188: #{tpu_custom_call.1} parent=1 // pred_region
      %1846 = dma.done [#allocation4], 256
    $region189: #{tpu_custom_call.1} parent=1 // pred_fallthru
      _
    %1847 = vsyncpa [#allocation3], 1
    %1848 = vsyncpa [#allocation6], 1
    %1849 = vsyncpa [#allocation9], 1
    %1850 = vsyncpa [#allocation12], 1
    %1851 = vsyncpa [#allocation15], 1
    %1852 = vsyncpa [#allocation18], 1
    %1853 = vsyncpa [#allocation21], 1
    %1854 = vsyncpa [#allocation24], 1
    %1855 = vsyncpa [#allocation27], 1
    %1856 = vsyncpa [#allocation30], 1
    %1857 = vsyncpa [#allocation4], 1

</llo_original>
